<compile_context>
chip_gen: v7x
topology: tpu7x:2x2x1
jax: 0.10.0
libtpu: 0.0.40
codegen_flags: <defaults>
</compile_context>

<pallas_src>
import functools

import numpy as np

import jax
import jax.numpy as jnp
from jax.experimental import pallas as pl
from jax.experimental.pallas import tpu as pltpu


def _round_up(x, m):
    return ((x + m - 1) // m) * m


def _make_kernel(KH, OHp, OH, OWCp, sh, inv_count, inv_tile, eps, neg_slope):
    mask_rows = OHp != OH

    def conv_tile(x_ref, w_ref):
        # y[oh, ow*Cout+co] = sum_i  x_rows[oh*sh + i, :] @ T_i[:, ow*Cout+co]
        acc = None
        for i in range(KH):
            if sh == 1:
                lhs = x_ref[i:i + OHp, :]
            else:
                # TODO(synk): strided-H (stride > 1) path is not exercised by the test.
                lhs = x_ref[pl.ds(i, OHp, sh), :]
            part = jnp.dot(lhs, w_ref[i], preferred_element_type=jnp.float32)
            acc = part if acc is None else acc + part
        if mask_rows:
            rid = jax.lax.broadcasted_iota(jnp.int32, (OHp, 1), 0)
            acc = jnp.where(rid < OH, acc, 0.0)
        return acc

    def kernel(x_ref, w_ref, r_ref, e_ref, g_ref, b_ref, o_ref, stat):
        phase = pl.program_id(0)
        m = pl.program_id(1)

        # ---- phase 0: shifted per-channel sum / sum-of-squares -------------
        @pl.when(phase == 0)
        def _():
            y = conv_tile(x_ref, w_ref)

            @pl.when(m == 0)
            def _():
                # Shift c ~= per-channel mean of the first tile.  The shifted
                # variance formula below is exact for any c; c near the mean
                # avoids catastrophic cancellation (review concern).
                colsum = jnp.sum(y, axis=0, keepdims=True)
                c_ch = jnp.dot(colsum, r_ref[...]) * inv_tile      # channel-lane layout
                stat[5:6, :] = c_ch
                stat[2:3, :] = jnp.dot(c_ch, e_ref[...])           # (ow,co)-lane layout
                stat[0:2, :] = jnp.zeros((2, OWCp), jnp.float32)

            d = y - stat[2:3, :]
            # NOTE: two 1-row RMWs per image per pass; could be fused into one
            # (2, OWCp) slab store but it is negligible at this grid granularity.
            stat[0:1, :] += jnp.sum(d, axis=0, keepdims=True)
            stat[1:2, :] += jnp.sum(d * d, axis=0, keepdims=True)

        # ---- phase 1: finalize scale/shift, recompute y, apply -------------
        @pl.when(phase == 1)
        def _():
            @pl.when(m == 0)
            def _():
                s1 = jnp.dot(stat[0:1, :], r_ref[...]) * inv_count   # E[y] - c
                s2 = jnp.dot(stat[1:2, :], r_ref[...]) * inv_count   # E[(y-c)^2]
                mean_c = stat[5:6, :] + s1
                var_c = s2 - s1 * s1                                 # biased batch var
                scale_c = g_ref[...] * jax.lax.rsqrt(var_c + eps)
                shift_c = b_ref[...] - mean_c * scale_c
                stat[3:4, :] = jnp.dot(scale_c, e_ref[...])          # per-lane scale
                stat[4:5, :] = jnp.dot(shift_c, e_ref[...])          # per-lane shift

            y = conv_tile(x_ref, w_ref)
            o = y * stat[3:4, :] + stat[4:5, :]
            o_ref[...] = jnp.maximum(o, neg_slope * o).astype(o_ref.dtype)

    return kernel


@functools.partial(jax.jit,
                   static_argnames=("stride", "padding", "eps", "neg_slope"))
def conv2d_n_rel(x_nchw, weight, gamma, beta, *, stride=(1, 1),
                 padding=(1, 1), eps=1e-5, neg_slope=0.01):
    N, Cin, H, W = x_nchw.shape
    Cout, _, KH, KW = weight.shape
    sh, sw = stride
    ph, pw = padding

    OH = (H + 2 * ph - KH) // sh + 1
    OW = (W + 2 * pw - KW) // sw + 1
    Hp, Wp = H + 2 * ph, W + 2 * pw
    K = Wp * Cin                                    # matmul contraction width
    OWC = OW * Cout
    OWCp = _round_up(OWC, 128)                      # lane-dense output width
    OHp = _round_up(OH, 8)
    Hp_pad = _round_up(max(Hp, (OHp - 1) * sh + KH), 8)

    # ---- activations: NCHW -> padded NHWC row slab (N*Hp_pad, Wp*Cin), bf16
    x = jnp.transpose(x_nchw, (0, 2, 3, 1))
    xp = jnp.pad(x, ((0, 0), (ph, ph), (pw, pw), (0, 0)))
    xr = jnp.pad(xp.reshape(N, Hp, K), ((0, 0), (0, Hp_pad - Hp), (0, 0)))
    x_rows = xr.reshape(N * Hp_pad, K).astype(jnp.bfloat16)

    # ---- weights: per-H-tap block-Toeplitz (along W) matrices (KH, K, OWCp)
    w_taps = jnp.transpose(weight.astype(jnp.float32), (2, 3, 1, 0))  # (KH,KW,Cin,Cout)
    P = np.zeros((KW, OW, Wp), np.float32)
    for j in range(KW):
        P[j, np.arange(OW), np.arange(OW) * sw + j] = 1.0
    T = jnp.einsum("jow,hjcd->hwcod", jnp.asarray(P), w_taps)         # (KH,Wp,Cin,OW,Cout)
    T = T.reshape(KH, K, OWC)
    T = jnp.pad(T, ((0, 0), (0, 0), (0, OWCp - OWC))).astype(jnp.bfloat16)

    # ---- (ow,co)-lane <-> channel-lane reduce / expand matrices -------------
    Rnp = np.zeros((OWCp, OWCp), np.float32)
    Rnp[np.arange(OWC), np.tile(np.arange(Cout), OW)] = 1.0
    Rm = jnp.asarray(Rnp)          # per-lane stats  -> per-channel
    Em = jnp.asarray(Rnp.T)        # per-channel row -> per-lane broadcast

    g = jnp.zeros((1, OWCp), jnp.float32).at[0, :Cout].set(gamma.astype(jnp.float32))
    b = jnp.zeros((1, OWCp), jnp.float32).at[0, :Cout].set(beta.astype(jnp.float32))

    kernel = _make_kernel(KH, OHp, OH, OWCp, sh,
                          inv_count=1.0 / float(N * OH * OW),
                          inv_tile=1.0 / float(OH * OW),
                          eps=float(eps), neg_slope=float(neg_slope))

    # ---- generation-aware VMEM budget + cost hint ---------------------------
    tile_bytes = (2 * Hp_pad * K * 2          # x tile (bf16, double-buffered)
                  + 2 * KH * K * OWCp * 2     # Toeplitz weights (bf16)
                  + 2 * 2 * OWCp * OWCp * 4   # R / E matrices
                  + 2 * 2 * OWCp * 4          # gamma / beta rows
                  + 2 * OHp * OWCp * 4        # output tile
                  + 8 * OWCp * 4)             # stats scratch
    try:
        vmem_phys = int(getattr(pltpu.get_tpu_info(), "vmem_capacity_bytes",
                                64 * 1024 * 1024))
    except Exception:
        vmem_phys = 64 * 1024 * 1024
    vmem_limit = int(min(max(tile_bytes + (2 << 20), 16 << 20), vmem_phys // 2))

    flops = 2 * 2 * N * KH * OHp * K * OWCp   # two passes over the conv matmuls
    bytes_accessed = (2 * x_rows.size * 2 + T.size * 2
                      + (Rm.size + Em.size + g.size + b.size) * 4
                      + N * OHp * OWCp * 4)

    out_flat = pl.pallas_call(
        kernel,
        out_shape=jax.ShapeDtypeStruct((N * OHp, OWCp), jnp.float32),
        grid_spec=pltpu.PrefetchScalarGridSpec(
            num_scalar_prefetch=0,
            grid=(2, N),                        # (phase, image); phase-major
            in_specs=[
                pl.BlockSpec((Hp_pad, K), lambda p, m: (m, 0)),
                pl.BlockSpec((KH, K, OWCp), lambda p, m: (0, 0, 0)),
                pl.BlockSpec((OWCp, OWCp), lambda p, m: (0, 0)),
                pl.BlockSpec((OWCp, OWCp), lambda p, m: (0, 0)),
                pl.BlockSpec((1, OWCp), lambda p, m: (0, 0)),
                pl.BlockSpec((1, OWCp), lambda p, m: (0, 0)),
            ],
            # output only written in phase 1; pinned to block 0 before that so
            # no garbage writebacks happen at the phase boundary
            out_specs=pl.BlockSpec((OHp, OWCp), lambda p, m: (p * m, 0)),
            scratch_shapes=[pltpu.VMEM((8, OWCp), jnp.float32)],
        ),
        compiler_params=pltpu.CompilerParams(
            dimension_semantics=("arbitrary", "arbitrary"),
            vmem_limit_bytes=vmem_limit),
        cost_estimate=pl.CostEstimate(flops=int(flops),
                                      transcendentals=int(OWCp),
                                      bytes_accessed=int(bytes_accessed)),
    )(x_rows, T, Rm, Em, g, b)

    out = out_flat.reshape(N, OHp, OWCp)[:, :OH, :OWC]
    out = out.reshape(N, OH, OW, Cout)
    return jnp.transpose(out, (0, 3, 1, 2)).astype(x_nchw.dtype)


def _reference(x, weight, gamma, beta, stride, padding, eps=1e-5, neg_slope=0.01):
    y = jax.lax.conv_general_dilated(
        x.astype(jnp.float32), weight.astype(jnp.float32),
        window_strides=stride, padding=[padding, padding],
        dimension_numbers=("NCHW", "OIHW", "NCHW"))
    mean = y.mean(axis=(0, 2, 3), keepdims=True)
    var = y.var(axis=(0, 2, 3), keepdims=True)          # biased, batch stats
    yn = (y - mean) / jnp.sqrt(var + eps)
    yn = yn * gamma.reshape(1, -1, 1, 1) + beta.reshape(1, -1, 1, 1)
    return jnp.where(yn >= 0, yn, neg_slope * yn)


if __name__ == "__main__":
    # Conv2d_N_REL(in_channels=4, out_channels=8, height=16, kernel_size=(3,3),
    #              stride=(1,1), padding=(1,1)); height/kernel_size[0] > 1 so
    #              the BatchNorm2d(track_running_stats=False) branch is active.
    N, Cin, H, W = 2, 4, 16, 16
    Cout, KH, KW = 8, 3, 3
    stride, padding = (1, 1), (1, 1)

    key = jax.random.PRNGKey(0)
    kx, kw, kg, kb = jax.random.split(key, 4)
    # non-zero-mean activations exercise the shifted-variance path
    x = jax.random.normal(kx, (N, Cin, H, W), dtype=jnp.float32) + 0.5
    fan_in = Cin * KH * KW
    weight = jax.random.normal(kw, (Cout, Cin, KH, KW), dtype=jnp.float32) * (
        (2.0 / fan_in) ** 0.5)
    gamma = 1.0 + 0.1 * jax.random.normal(kg, (Cout,), dtype=jnp.float32)
    beta = 0.1 * jax.random.normal(kb, (Cout,), dtype=jnp.float32)

    out = conv2d_n_rel(x, weight, gamma, beta, stride=stride, padding=padding)
    out = jax.block_until_ready(out)

    ref = _reference(x, weight, gamma, beta, stride, padding)
    assert out.shape == (N, Cout, H, W), out.shape
    max_err = float(jnp.max(jnp.abs(out - ref)))
    assert jnp.allclose(out, ref, rtol=5e-2, atol=5e-2), max_err

    print("KERNEL_OK")
</pallas_src>

<mosaic_0001>
module attributes {stable_mosaic.version = 11 : i64} {
  func.func @kernel(%arg0: i32, %arg1: i32, %arg2: memref<24x72xbf16, #tpu.memory_space<vmem>>, %arg3: memref<3x72x128xbf16, #tpu.memory_space<vmem>>, %arg4: memref<128x128xf32, #tpu.memory_space<vmem>>, %arg5: memref<128x128xf32, #tpu.memory_space<vmem>>, %arg6: memref<1x128xf32, #tpu.memory_space<vmem>>, %arg7: memref<1x128xf32, #tpu.memory_space<vmem>>, %arg8: memref<16x128xf32, #tpu.memory_space<vmem>>, %arg9: memref<8x128xf32, #tpu.memory_space<vmem>>) attributes {dimension_semantics = [#tpu.dimension_semantics<arbitrary>, #tpu.dimension_semantics<arbitrary>], iteration_bounds = array<i64: 2, 2>, scalar_prefetch = 0 : i64, scratch_operands = 1 : i64, tpu.core_type = #tpu.core_type<tc>, window_params = [{transform_indices = @transform_0, window_bounds = array<i64: 24, 72>}, {pipeline_mode = #tpu.pipeline_mode<synchronous>, transform_indices = @transform_1, window_bounds = array<i64: 3, 72, 128>}, {pipeline_mode = #tpu.pipeline_mode<synchronous>, transform_indices = @transform_2, window_bounds = array<i64: 128, 128>}, {pipeline_mode = #tpu.pipeline_mode<synchronous>, transform_indices = @transform_3, window_bounds = array<i64: 128, 128>}, {pipeline_mode = #tpu.pipeline_mode<synchronous>, transform_indices = @transform_4, window_bounds = array<i64: 1, 128>}, {pipeline_mode = #tpu.pipeline_mode<synchronous>, transform_indices = @transform_5, window_bounds = array<i64: 1, 128>}, {transform_indices = @transform_6, window_bounds = array<i64: 16, 128>}]} {
    %c0_i32 = arith.constant 0 : i32
    %0 = arith.cmpi eq, %arg0, %c0_i32 : i32
    %1 = arith.extui %0 : i1 to i32
    %c0_i32_0 = arith.constant 0 : i32
    %2 = arith.cmpi ne, %1, %c0_i32_0 : i32
    scf.if %2 {
      %c0 = arith.constant 0 : index
      %c0_2 = arith.constant 0 : index
      %6 = vector.load %arg2[%c0, %c0_2] : memref<24x72xbf16, #tpu.memory_space<vmem>>, vector<16x72xbf16>
      %c0_3 = arith.constant 0 : index
      %c0_4 = arith.constant 0 : index
      %c0_5 = arith.constant 0 : index
      %7 = vector.load %arg3[%c0_3, %c0_4, %c0_5] : memref<3x72x128xbf16, #tpu.memory_space<vmem>>, vector<1x72x128xbf16>
      %8 = vector.shape_cast %7 : vector<1x72x128xbf16> to vector<72x128xbf16>
      %cst = arith.constant dense<0.000000e+00> : vector<16x128xf32>
      %9 = tpu.matmul %6, %8, %cst {dimension_numbers = #tpu.dot_dimension_numbers<[1], [0], [0], [1], [0, 0, 1, 1], [], []>} : vector<16x72xbf16>, vector<72x128xbf16>, vector<16x128xf32> -> vector<16x128xf32>
      %c1 = arith.constant 1 : index
      %c0_6 = arith.constant 0 : index
      %10 = vector.load %arg2[%c1, %c0_6] : memref<24x72xbf16, #tpu.memory_space<vmem>>, vector<16x72xbf16>
      %c1_7 = arith.constant 1 : index
      %c0_8 = arith.constant 0 : index
      %c0_9 = arith.constant 0 : index
      %11 = vector.load %arg3[%c1_7, %c0_8, %c0_9] : memref<3x72x128xbf16, #tpu.memory_space<vmem>>, vector<1x72x128xbf16>
      %12 = vector.shape_cast %11 : vector<1x72x128xbf16> to vector<72x128xbf16>
      %cst_10 = arith.constant dense<0.000000e+00> : vector<16x128xf32>
      %13 = tpu.matmul %10, %12, %cst_10 {dimension_numbers = #tpu.dot_dimension_numbers<[1], [0], [0], [1], [0, 0, 1, 1], [], []>} : vector<16x72xbf16>, vector<72x128xbf16>, vector<16x128xf32> -> vector<16x128xf32>
      %14 = arith.addf %9, %13 : vector<16x128xf32>
      %c2 = arith.constant 2 : index
      %c0_11 = arith.constant 0 : index
      %15 = vector.load %arg2[%c2, %c0_11] : memref<24x72xbf16, #tpu.memory_space<vmem>>, vector<16x72xbf16>
      %c2_12 = arith.constant 2 : index
      %c0_13 = arith.constant 0 : index
      %c0_14 = arith.constant 0 : index
      %16 = vector.load %arg3[%c2_12, %c0_13, %c0_14] : memref<3x72x128xbf16, #tpu.memory_space<vmem>>, vector<1x72x128xbf16>
      %17 = vector.shape_cast %16 : vector<1x72x128xbf16> to vector<72x128xbf16>
      %cst_15 = arith.constant dense<0.000000e+00> : vector<16x128xf32>
      %18 = tpu.matmul %15, %17, %cst_15 {dimension_numbers = #tpu.dot_dimension_numbers<[1], [0], [0], [1], [0, 0, 1, 1], [], []>} : vector<16x72xbf16>, vector<72x128xbf16>, vector<16x128xf32> -> vector<16x128xf32>
      %19 = arith.addf %14, %18 : vector<16x128xf32>
      %c0_i32_16 = arith.constant 0 : i32
      %20 = arith.cmpi eq, %arg1, %c0_i32_16 : i32
      %21 = arith.extui %20 : i1 to i32
      %c0_i32_17 = arith.constant 0 : i32
      %22 = arith.cmpi ne, %21, %c0_i32_17 : i32
      scf.if %22 {
        %cst_30 = arith.constant dense<0.000000e+00> : vector<128xf32>
        %37 = vector.multi_reduction <add>, %19, %cst_30 [0] : vector<16x128xf32> to vector<128xf32>
        %38 = vector.shape_cast %37 : vector<128xf32> to vector<1x128xf32>
        %c0_31 = arith.constant 0 : index
        %c0_32 = arith.constant 0 : index
        %39 = vector.load %arg4[%c0_31, %c0_32] : memref<128x128xf32, #tpu.memory_space<vmem>>, vector<128x128xf32>
        %cst_33 = arith.constant dense<0.000000e+00> : vector<1x128xf32>
        %40 = tpu.matmul %38, %39, %cst_33 {dimension_numbers = #tpu.dot_dimension_numbers<[1], [0], [0], [1], [0, 0, 1, 1], [], []>} : vector<1x128xf32>, vector<128x128xf32>, vector<1x128xf32> -> vector<1x128xf32>
        %cst_34 = arith.constant 3.906250e-03 : f32
        %41 = vector.broadcast %cst_34 : f32 to vector<1x128xf32>
        %42 = arith.mulf %40, %41 : vector<1x128xf32>
        %c5 = arith.constant 5 : index
        %c0_35 = arith.constant 0 : index
        %43 = vector.load %arg9[%c5, %c0_35] : memref<8x128xf32, #tpu.memory_space<vmem>>, vector<1x128xf32>
        tpu.vector_store %arg9[%c5, %c0_35], %42 {strides = array<i32>} : memref<8x128xf32, #tpu.memory_space<vmem>>, vector<1x128xf32>,
        %c0_36 = arith.constant 0 : index
        %c0_37 = arith.constant 0 : index
        %44 = vector.load %arg5[%c0_36, %c0_37] : memref<128x128xf32, #tpu.memory_space<vmem>>, vector<128x128xf32>
        %cst_38 = arith.constant dense<0.000000e+00> : vector<1x128xf32>
        %45 = tpu.matmul %42, %44, %cst_38 {dimension_numbers = #tpu.dot_dimension_numbers<[1], [0], [0], [1], [0, 0, 1, 1], [], []>} : vector<1x128xf32>, vector<128x128xf32>, vector<1x128xf32> -> vector<1x128xf32>
        %c2_39 = arith.constant 2 : index
        %c0_40 = arith.constant 0 : index
        %46 = vector.load %arg9[%c2_39, %c0_40] : memref<8x128xf32, #tpu.memory_space<vmem>>, vector<1x128xf32>
        tpu.vector_store %arg9[%c2_39, %c0_40], %45 {strides = array<i32>} : memref<8x128xf32, #tpu.memory_space<vmem>>, vector<1x128xf32>,
        %cst_41 = arith.constant 0.000000e+00 : f32
        %47 = vector.broadcast %cst_41 : f32 to vector<2x128xf32>
        %c0_42 = arith.constant 0 : index
        %c0_43 = arith.constant 0 : index
        %48 = vector.load %arg9[%c0_42, %c0_43] : memref<8x128xf32, #tpu.memory_space<vmem>>, vector<2x128xf32>
        tpu.vector_store %arg9[%c0_42, %c0_43], %47 {strides = array<i32>} : memref<8x128xf32, #tpu.memory_space<vmem>>, vector<2x128xf32>,
      } else {
      }
      %c2_18 = arith.constant 2 : index
      %c0_19 = arith.constant 0 : index
      %23 = vector.load %arg9[%c2_18, %c0_19] : memref<8x128xf32, #tpu.memory_space<vmem>>, vector<1x128xf32>
      %24 = vector.broadcast %23 : vector<1x128xf32> to vector<16x128xf32>
      %25 = arith.subf %19, %24 : vector<16x128xf32>
      %c0_20 = arith.constant 0 : index
      %c0_21 = arith.constant 0 : index
      %26 = vector.load %arg9[%c0_20, %c0_21] : memref<8x128xf32, #tpu.memory_space<vmem>>, vector<1x128xf32>
      %cst_22 = arith.constant dense<0.000000e+00> : vector<128xf32>
      %27 = vector.multi_reduction <add>, %25, %cst_22 [0] : vector<16x128xf32> to vector<128xf32>
      %28 = vector.shape_cast %27 : vector<128xf32> to vector<1x128xf32>
      %29 = arith.addf %26, %28 : vector<1x128xf32>
      %c0_23 = arith.constant 0 : index
      %c0_24 = arith.constant 0 : index
      %30 = vector.load %arg9[%c0_23, %c0_24] : memref<8x128xf32, #tpu.memory_space<vmem>>, vector<1x128xf32>
      tpu.vector_store %arg9[%c0_23, %c0_24], %29 {strides = array<i32>} : memref<8x128xf32, #tpu.memory_space<vmem>>, vector<1x128xf32>,
      %c1_25 = arith.constant 1 : index
      %c0_26 = arith.constant 0 : index
      %31 = vector.load %arg9[%c1_25, %c0_26] : memref<8x128xf32, #tpu.memory_space<vmem>>, vector<1x128xf32>
      %32 = arith.mulf %25, %25 : vector<16x128xf32>
      %cst_27 = arith.constant dense<0.000000e+00> : vector<128xf32>
      %33 = vector.multi_reduction <add>, %32, %cst_27 [0] : vector<16x128xf32> to vector<128xf32>
      %34 = vector.shape_cast %33 : vector<128xf32> to vector<1x128xf32>
      %35 = arith.addf %31, %34 : vector<1x128xf32>
      %c1_28 = arith.constant 1 : index
      %c0_29 = arith.constant 0 : index
      %36 = vector.load %arg9[%c1_28, %c0_29] : memref<8x128xf32, #tpu.memory_space<vmem>>, vector<1x128xf32>
      tpu.vector_store %arg9[%c1_28, %c0_29], %35 {strides = array<i32>} : memref<8x128xf32, #tpu.memory_space<vmem>>, vector<1x128xf32>,
    } else {
    }
    %c1_i32 = arith.constant 1 : i32
    %3 = arith.cmpi eq, %arg0, %c1_i32 : i32
    %4 = arith.extui %3 : i1 to i32
    %c0_i32_1 = arith.constant 0 : i32
    %5 = arith.cmpi ne, %4, %c0_i32_1 : i32
    scf.if %5 {
      %c0_i32_2 = arith.constant 0 : i32
      %6 = arith.cmpi eq, %arg1, %c0_i32_2 : i32
      %7 = arith.extui %6 : i1 to i32
      %c0_i32_3 = arith.constant 0 : i32
      %8 = arith.cmpi ne, %7, %c0_i32_3 : i32
      scf.if %8 {
        %c0_23 = arith.constant 0 : index
        %c0_24 = arith.constant 0 : index
        %33 = vector.load %arg9[%c0_23, %c0_24] : memref<8x128xf32, #tpu.memory_space<vmem>>, vector<1x128xf32>
        %c0_25 = arith.constant 0 : index
        %c0_26 = arith.constant 0 : index
        %34 = vector.load %arg4[%c0_25, %c0_26] : memref<128x128xf32, #tpu.memory_space<vmem>>, vector<128x128xf32>
        %cst_27 = arith.constant dense<0.000000e+00> : vector<1x128xf32>
        %35 = tpu.matmul %33, %34, %cst_27 {dimension_numbers = #tpu.dot_dimension_numbers<[1], [0], [0], [1], [0, 0, 1, 1], [], []>} : vector<1x128xf32>, vector<128x128xf32>, vector<1x128xf32> -> vector<1x128xf32>
        %cst_28 = arith.constant 0.001953125 : f32
        %36 = vector.broadcast %cst_28 : f32 to vector<1x128xf32>
        %37 = arith.mulf %35, %36 : vector<1x128xf32>
        %c1_29 = arith.constant 1 : index
        %c0_30 = arith.constant 0 : index
        %38 = vector.load %arg9[%c1_29, %c0_30] : memref<8x128xf32, #tpu.memory_space<vmem>>, vector<1x128xf32>
        %c0_31 = arith.constant 0 : index
        %c0_32 = arith.constant 0 : index
        %39 = vector.load %arg4[%c0_31, %c0_32] : memref<128x128xf32, #tpu.memory_space<vmem>>, vector<128x128xf32>
        %cst_33 = arith.constant dense<0.000000e+00> : vector<1x128xf32>
        %40 = tpu.matmul %38, %39, %cst_33 {dimension_numbers = #tpu.dot_dimension_numbers<[1], [0], [0], [1], [0, 0, 1, 1], [], []>} : vector<1x128xf32>, vector<128x128xf32>, vector<1x128xf32> -> vector<1x128xf32>
        %cst_34 = arith.constant 0.001953125 : f32
        %41 = vector.broadcast %cst_34 : f32 to vector<1x128xf32>
        %42 = arith.mulf %40, %41 : vector<1x128xf32>
        %c5 = arith.constant 5 : index
        %c0_35 = arith.constant 0 : index
        %43 = vector.load %arg9[%c5, %c0_35] : memref<8x128xf32, #tpu.memory_space<vmem>>, vector<1x128xf32>
        %44 = arith.addf %43, %37 : vector<1x128xf32>
        %45 = arith.mulf %37, %37 : vector<1x128xf32>
        %46 = arith.subf %42, %45 : vector<1x128xf32>
        %c0_36 = arith.constant 0 : index
        %c0_37 = arith.constant 0 : index
        %47 = vector.load %arg6[%c0_36, %c0_37] : memref<1x128xf32, #tpu.memory_space<vmem>>, vector<1x128xf32>
        %cst_38 = arith.constant 9.99999974E-6 : f32
        %48 = vector.broadcast %cst_38 : f32 to vector<1x128xf32>
        %49 = arith.addf %46, %48 : vector<1x128xf32>
        %50 = math.rsqrt %49 : vector<1x128xf32>
        %51 = arith.mulf %47, %50 : vector<1x128xf32>
        %c0_39 = arith.constant 0 : index
        %c0_40 = arith.constant 0 : index
        %52 = vector.load %arg7[%c0_39, %c0_40] : memref<1x128xf32, #tpu.memory_space<vmem>>, vector<1x128xf32>
        %53 = arith.mulf %44, %51 : vector<1x128xf32>
        %54 = arith.subf %52, %53 : vector<1x128xf32>
        %c0_41 = arith.constant 0 : index
        %c0_42 = arith.constant 0 : index
        %55 = vector.load %arg5[%c0_41, %c0_42] : memref<128x128xf32, #tpu.memory_space<vmem>>, vector<128x128xf32>
        %cst_43 = arith.constant dense<0.000000e+00> : vector<1x128xf32>
        %56 = tpu.matmul %51, %55, %cst_43 {dimension_numbers = #tpu.dot_dimension_numbers<[1], [0], [0], [1], [0, 0, 1, 1], [], []>} : vector<1x128xf32>, vector<128x128xf32>, vector<1x128xf32> -> vector<1x128xf32>
        %c3_44 = arith.constant 3 : index
        %c0_45 = arith.constant 0 : index
        %57 = vector.load %arg9[%c3_44, %c0_45] : memref<8x128xf32, #tpu.memory_space<vmem>>, vector<1x128xf32>
        tpu.vector_store %arg9[%c3_44, %c0_45], %56 {strides = array<i32>} : memref<8x128xf32, #tpu.memory_space<vmem>>, vector<1x128xf32>,
        %c0_46 = arith.constant 0 : index
        %c0_47 = arith.constant 0 : index
        %58 = vector.load %arg5[%c0_46, %c0_47] : memref<128x128xf32, #tpu.memory_space<vmem>>, vector<128x128xf32>
        %cst_48 = arith.constant dense<0.000000e+00> : vector<1x128xf32>
        %59 = tpu.matmul %54, %58, %cst_48 {dimension_numbers = #tpu.dot_dimension_numbers<[1], [0], [0], [1], [0, 0, 1, 1], [], []>} : vector<1x128xf32>, vector<128x128xf32>, vector<1x128xf32> -> vector<1x128xf32>
        %c4_49 = arith.constant 4 : index
        %c0_50 = arith.constant 0 : index
        %60 = vector.load %arg9[%c4_49, %c0_50] : memref<8x128xf32, #tpu.memory_space<vmem>>, vector<1x128xf32>
        tpu.vector_store %arg9[%c4_49, %c0_50], %59 {strides = array<i32>} : memref<8x128xf32, #tpu.memory_space<vmem>>, vector<1x128xf32>,
      } else {
      }
      %c0 = arith.constant 0 : index
      %c0_4 = arith.constant 0 : index
      %9 = vector.load %arg2[%c0, %c0_4] : memref<24x72xbf16, #tpu.memory_space<vmem>>, vector<16x72xbf16>
      %c0_5 = arith.constant 0 : index
      %c0_6 = arith.constant 0 : index
      %c0_7 = arith.constant 0 : index
      %10 = vector.load %arg3[%c0_5, %c0_6, %c0_7] : memref<3x72x128xbf16, #tpu.memory_space<vmem>>, vector<1x72x128xbf16>
      %11 = vector.shape_cast %10 : vector<1x72x128xbf16> to vector<72x128xbf16>
      %cst = arith.constant dense<0.000000e+00> : vector<16x128xf32>
      %12 = tpu.matmul %9, %11, %cst {dimension_numbers = #tpu.dot_dimension_numbers<[1], [0], [0], [1], [0, 0, 1, 1], [], []>} : vector<16x72xbf16>, vector<72x128xbf16>, vector<16x128xf32> -> vector<16x128xf32>
      %c1 = arith.constant 1 : index
      %c0_8 = arith.constant 0 : index
      %13 = vector.load %arg2[%c1, %c0_8] : memref<24x72xbf16, #tpu.memory_space<vmem>>, vector<16x72xbf16>
      %c1_9 = arith.constant 1 : index
      %c0_10 = arith.constant 0 : index
      %c0_11 = arith.constant 0 : index
      %14 = vector.load %arg3[%c1_9, %c0_10, %c0_11] : memref<3x72x128xbf16, #tpu.memory_space<vmem>>, vector<1x72x128xbf16>
      %15 = vector.shape_cast %14 : vector<1x72x128xbf16> to vector<72x128xbf16>
      %cst_12 = arith.constant dense<0.000000e+00> : vector<16x128xf32>
      %16 = tpu.matmul %13, %15, %cst_12 {dimension_numbers = #tpu.dot_dimension_numbers<[1], [0], [0], [1], [0, 0, 1, 1], [], []>} : vector<16x72xbf16>, vector<72x128xbf16>, vector<16x128xf32> -> vector<16x128xf32>
      %17 = arith.addf %12, %16 : vector<16x128xf32>
      %c2 = arith.constant 2 : index
      %c0_13 = arith.constant 0 : index
      %18 = vector.load %arg2[%c2, %c0_13] : memref<24x72xbf16, #tpu.memory_space<vmem>>, vector<16x72xbf16>
      %c2_14 = arith.constant 2 : index
      %c0_15 = arith.constant 0 : index
      %c0_16 = arith.constant 0 : index
      %19 = vector.load %arg3[%c2_14, %c0_15, %c0_16] : memref<3x72x128xbf16, #tpu.memory_space<vmem>>, vector<1x72x128xbf16>
      %20 = vector.shape_cast %19 : vector<1x72x128xbf16> to vector<72x128xbf16>
      %cst_17 = arith.constant dense<0.000000e+00> : vector<16x128xf32>
      %21 = tpu.matmul %18, %20, %cst_17 {dimension_numbers = #tpu.dot_dimension_numbers<[1], [0], [0], [1], [0, 0, 1, 1], [], []>} : vector<16x72xbf16>, vector<72x128xbf16>, vector<16x128xf32> -> vector<16x128xf32>
      %22 = arith.addf %17, %21 : vector<16x128xf32>
      %c3 = arith.constant 3 : index
      %c0_18 = arith.constant 0 : index
      %23 = vector.load %arg9[%c3, %c0_18] : memref<8x128xf32, #tpu.memory_space<vmem>>, vector<1x128xf32>
      %24 = vector.broadcast %23 : vector<1x128xf32> to vector<16x128xf32>
      %25 = arith.mulf %22, %24 : vector<16x128xf32>
      %c4 = arith.constant 4 : index
      %c0_19 = arith.constant 0 : index
      %26 = vector.load %arg9[%c4, %c0_19] : memref<8x128xf32, #tpu.memory_space<vmem>>, vector<1x128xf32>
      %27 = vector.broadcast %26 : vector<1x128xf32> to vector<16x128xf32>
      %28 = arith.addf %25, %27 : vector<16x128xf32>
      %cst_20 = arith.constant 0.00999999977 : f32
      %29 = vector.broadcast %cst_20 : f32 to vector<16x128xf32>
      %30 = arith.mulf %29, %28 : vector<16x128xf32>
      %31 = arith.maximumf %28, %30 : vector<16x128xf32>
      %c0_21 = arith.constant 0 : index
      %c0_22 = arith.constant 0 : index
      %32 = vector.load %arg8[%c0_21, %c0_22] : memref<16x128xf32, #tpu.memory_space<vmem>>, vector<16x128xf32>
      tpu.vector_store %arg8[%c0_21, %c0_22], %31 {strides = array<i32>} : memref<16x128xf32, #tpu.memory_space<vmem>>, vector<16x128xf32>,
    } else {
    }
    return
  }
  func.func @transform_0(%arg0: i32, %arg1: i32) -> (i32, i32) {
    %c0_i32 = arith.constant 0 : i32
    %c0_i32_0 = arith.constant 0 : i32
    return %arg1, %c0_i32 : i32, i32
  }
  func.func @transform_1(%arg0: i32, %arg1: i32) -> (i32, i32, i32) {
    %c0_i32 = arith.constant 0 : i32
    %c0_i32_0 = arith.constant 0 : i32
    %c0_i32_1 = arith.constant 0 : i32
    %c0_i32_2 = arith.constant 0 : i32
    return %c0_i32, %c0_i32_0, %c0_i32_1 : i32, i32, i32
  }
  func.func @transform_2(%arg0: i32, %arg1: i32) -> (i32, i32) {
    %c0_i32 = arith.constant 0 : i32
    %c0_i32_0 = arith.constant 0 : i32
    %c0_i32_1 = arith.constant 0 : i32
    return %c0_i32, %c0_i32_0 : i32, i32
  }
  func.func @transform_3(%arg0: i32, %arg1: i32) -> (i32, i32) {
    %c0_i32 = arith.constant 0 : i32
    %c0_i32_0 = arith.constant 0 : i32
    %c0_i32_1 = arith.constant 0 : i32
    return %c0_i32, %c0_i32_0 : i32, i32
  }
  func.func @transform_4(%arg0: i32, %arg1: i32) -> (i32, i32) {
    %c0_i32 = arith.constant 0 : i32
    %c0_i32_0 = arith.constant 0 : i32
    %c0_i32_1 = arith.constant 0 : i32
    return %c0_i32, %c0_i32_0 : i32, i32
  }
  func.func @transform_5(%arg0: i32, %arg1: i32) -> (i32, i32) {
    %c0_i32 = arith.constant 0 : i32
    %c0_i32_0 = arith.constant 0 : i32
    %c0_i32_1 = arith.constant 0 : i32
    return %c0_i32, %c0_i32_0 : i32, i32
  }
  func.func @transform_6(%arg0: i32, %arg1: i32) -> (i32, i32) {
    %0 = arith.muli %arg0, %arg1 : i32
    %c0_i32 = arith.constant 0 : i32
    %c0_i32_0 = arith.constant 0 : i32
    return %0, %c0_i32 : i32, i32
  }
}

</mosaic_0001>

<llo_original>
// kernel: conv2d_n_rel.1
$region0: #{conv2d_n_rel.1}
  #allocation0 [shape = 'u32[]', space=smem, size = 0x4, offset = 0x4, fixed_abs, tag = 'smem constant byte address 0x4 - core index']
  #allocation1 [shape = 'u32[144,128]{1,0:T(1,128)}', space=vmem, size = 0x12000, scoped, tag = 'internal scratch']
  #allocation2 [shape = 'f32[8,128]{1,0:T(8,128)}', space=vmem, size = 0x1000, scoped, tag = 'scratch operand']
  %s0 = inlined_call_operand.vmem [shape: bf16[48,72], index: 0, kind: input, shape index: {}]
  %s1 = inlined_call_operand.vmem [shape: bf16[3,72,128], index: 1, kind: input, shape index: {}]
  %s2 = inlined_call_operand.vmem [shape: f32[128,128], index: 2, kind: input, shape index: {}]
  %s3 = inlined_call_operand.vmem [shape: f32[128,128], index: 3, kind: input, shape index: {}]
  %s4 = inlined_call_operand.vmem [shape: f32[1,128], index: 4, kind: input, shape index: {}]
  %s5 = inlined_call_operand.vmem [shape: f32[1,128], index: 5, kind: input, shape index: {}]
  %s6 = inlined_call_operand.vmem [shape: f32[32,128], index: 6, kind: output, shape index: {}]
  %s7 = sld [smem:[#allocation0]]
  $region73: #{conv2d_n_rel.1} parent=0
    _
  %s9 = ssub.s32 1, %s7
  %s10 = scalar_select 0, %s9, %s7
  loop: start=0, step=1, limit=6
  $region2: #{conv2d_n_rel.1} parent=0 // loop_pre_header
    _
  $region3: #{conv2d_n_rel.1} parent=0 // loop_header
    %s12 = sphi 0, %s16
    %p13 = scmp.ge.s32.totalorder %s12, 6
    %s19 = sphi 0, %s31
    %s20 = sphi 0, %s27
    %s21 = sphi 0, %s19
    %s22 = sphi 0, %s20
    %s23 = sphi 0, %s21
    %s24 = sphi 0, %s22
    %s34 = sphi 0, %s36
    %s37 = sphi 0, %s34
    %s38 = sphi 0, %s37
    %s54 = sphi 0, %s38
    %s58 = sphi 0, %s58
    %s60 = sphi 0, %s58
    %s61 = sphi 0, %s60
    %s75 = sphi 0, %s61
    %s79 = sphi 0, %s79
    %s81 = sphi 0, %s79
    %s82 = sphi 0, %s81
    %s96 = sphi 0, %s82
    %s100 = sphi 0, %s100
    %s102 = sphi 0, %s100
    %s103 = sphi 0, %s102
    %s117 = sphi 0, %s103
    %s121 = sphi 0, %s121
    %s123 = sphi 0, %s121
    %s124 = sphi 0, %s123
    %s138 = sphi 0, %s124
    %s142 = sphi 0, %s142
    %s144 = sphi 0, %s142
    %s145 = sphi 0, %s144
    %s159 = sphi 0, %s145
    %s167 = sphi 0, %s169
    %s170 = sphi 0, %s167
    %s171 = sphi 0, %s170
    %s187 = sphi 0, %s171
  $region4: #{conv2d_n_rel.1} parent=0 // loop_header_branch
    %15 = sbr.rel (%p13) target = $region8
  $region5: #{conv2d_n_rel.1} parent=0 // loop_body
    %s17 = ssub.s32 %s12, 1
    %s18 = ssub.s32 %s12, 2
    %s25 = sadd.s32 1, %s20
    %p26 = scmp.ge.s32.totalorder %s25, 2
    %s27 = scalar_select %p26, 0, %s25
    %s28 = sadd.s32 1, %s19
    %s29 = scalar_select %p26, %s28, %s19
    %p30 = scmp.ge.s32.totalorder %s29, 2
    %s31 = scalar_select %p30, 0, %s29
    %s32 = ssub.s32 %s20, %s27
    %p33 = scmp.eq.s32.totalorder %s32, 0
    %s35 = sadd.s32 %s34, 1
    %s36 = scalar_select %p33, %s34, %s35
    %p39 = pneg %p33
    %p40 = scmp.eq.s32.totalorder %s12, 3
    %p41 = por %p39, %p40
    %p42 = scmp.ne.s32.totalorder %s34, %s37
    %p43 = scmp.eq.s32.totalorder %s12, 0
    %p44 = por %p42, %p43
    %p45 = scmp.ne.s32.totalorder %s34, %s37
    %p46 = scmp.eq.s32.totalorder %s17, 3
    %p47 = por %p45, %p46
    %p48 = scmp.ne.s32.totalorder %s37, %s38
    %p49 = scmp.eq.s32.totalorder %s17, 0
    %p50 = por %p48, %p49
    %p51 = scmp.ne.s32.totalorder %s37, %s38
    %p52 = scmp.eq.s32.totalorder %s18, 3
    %p53 = por %p51, %p52
    %p55 = scmp.ne.s32.totalorder %s38, %s54
    %p56 = scmp.eq.s32.totalorder %s18, 0
    %p57 = por %p55, %p56
    %s59 = sadd.s32 %s58, 1
    %p62 = scmp.eq.s32.totalorder %s12, 3
    %p63 = scmp.ne.s32.totalorder %s58, %s60
    %p64 = scmp.eq.s32.totalorder %s12, 0
    %p65 = por %p63, %p64
    %p66 = scmp.ne.s32.totalorder %s58, %s60
    %p67 = scmp.eq.s32.totalorder %s17, 3
    %p68 = por %p66, %p67
    %p69 = scmp.ne.s32.totalorder %s60, %s61
    %p70 = scmp.eq.s32.totalorder %s17, 0
    %p71 = por %p69, %p70
    %p72 = scmp.ne.s32.totalorder %s60, %s61
    %p73 = scmp.eq.s32.totalorder %s18, 3
    %p74 = por %p72, %p73
    %p76 = scmp.ne.s32.totalorder %s61, %s75
    %p77 = scmp.eq.s32.totalorder %s18, 0
    %p78 = por %p76, %p77
    %s80 = sadd.s32 %s79, 1
    %p83 = scmp.eq.s32.totalorder %s12, 3
    %p84 = scmp.ne.s32.totalorder %s79, %s81
    %p85 = scmp.eq.s32.totalorder %s12, 0
    %p86 = por %p84, %p85
    %p87 = scmp.ne.s32.totalorder %s79, %s81
    %p88 = scmp.eq.s32.totalorder %s17, 3
    %p89 = por %p87, %p88
    %p90 = scmp.ne.s32.totalorder %s81, %s82
    %p91 = scmp.eq.s32.totalorder %s17, 0
    %p92 = por %p90, %p91
    %p93 = scmp.ne.s32.totalorder %s81, %s82
    %p94 = scmp.eq.s32.totalorder %s18, 3
    %p95 = por %p93, %p94
    %p97 = scmp.ne.s32.totalorder %s82, %s96
    %p98 = scmp.eq.s32.totalorder %s18, 0
    %p99 = por %p97, %p98
    %s101 = sadd.s32 %s100, 1
    %p104 = scmp.eq.s32.totalorder %s12, 3
    %p105 = scmp.ne.s32.totalorder %s100, %s102
    %p106 = scmp.eq.s32.totalorder %s12, 0
    %p107 = por %p105, %p106
    %p108 = scmp.ne.s32.totalorder %s100, %s102
    %p109 = scmp.eq.s32.totalorder %s17, 3
    %p110 = por %p108, %p109
    %p111 = scmp.ne.s32.totalorder %s102, %s103
    %p112 = scmp.eq.s32.totalorder %s17, 0
    %p113 = por %p111, %p112
    %p114 = scmp.ne.s32.totalorder %s102, %s103
    %p115 = scmp.eq.s32.totalorder %s18, 3
    %p116 = por %p114, %p115
    %p118 = scmp.ne.s32.totalorder %s103, %s117
    %p119 = scmp.eq.s32.totalorder %s18, 0
    %p120 = por %p118, %p119
    %s122 = sadd.s32 %s121, 1
    %p125 = scmp.eq.s32.totalorder %s12, 3
    %p126 = scmp.ne.s32.totalorder %s121, %s123
    %p127 = scmp.eq.s32.totalorder %s12, 0
    %p128 = por %p126, %p127
    %p129 = scmp.ne.s32.totalorder %s121, %s123
    %p130 = scmp.eq.s32.totalorder %s17, 3
    %p131 = por %p129, %p130
    %p132 = scmp.ne.s32.totalorder %s123, %s124
    %p133 = scmp.eq.s32.totalorder %s17, 0
    %p134 = por %p132, %p133
    %p135 = scmp.ne.s32.totalorder %s123, %s124
    %p136 = scmp.eq.s32.totalorder %s18, 3
    %p137 = por %p135, %p136
    %p139 = scmp.ne.s32.totalorder %s124, %s138
    %p140 = scmp.eq.s32.totalorder %s18, 0
    %p141 = por %p139, %p140
    %s143 = sadd.s32 %s142, 1
    %p146 = scmp.eq.s32.totalorder %s12, 3
    %p147 = scmp.ne.s32.totalorder %s142, %s144
    %p148 = scmp.eq.s32.totalorder %s12, 0
    %p149 = por %p147, %p148
    %p150 = scmp.ne.s32.totalorder %s142, %s144
    %p151 = scmp.eq.s32.totalorder %s17, 3
    %p152 = por %p150, %p151
    %p153 = scmp.ne.s32.totalorder %s144, %s145
    %p154 = scmp.eq.s32.totalorder %s17, 0
    %p155 = por %p153, %p154
    %p156 = scmp.ne.s32.totalorder %s144, %s145
    %p157 = scmp.eq.s32.totalorder %s18, 3
    %p158 = por %p156, %p157
    %p160 = scmp.ne.s32.totalorder %s145, %s159
    %p161 = scmp.eq.s32.totalorder %s18, 0
    %p162 = por %p160, %p161
    %s163 = smul.u32 %s19, %s20
    %s164 = smul.u32 %s31, %s27
    %s165 = ssub.s32 %s163, %s164
    %p166 = scmp.eq.s32.totalorder %s165, 0
    %s168 = sadd.s32 %s167, 1
    %s169 = scalar_select %p166, %s167, %s168
    %p172 = pneg %p166
    %p173 = scmp.eq.s32.totalorder %s12, 3
    %p174 = por %p172, %p173
    %p175 = scmp.ne.s32.totalorder %s167, %s170
    %p176 = scmp.eq.s32.totalorder %s12, 0
    %p177 = por %p175, %p176
    %p178 = scmp.ne.s32.totalorder %s167, %s170
    %p179 = scmp.eq.s32.totalorder %s17, 3
    %p180 = por %p178, %p179
    %p181 = scmp.ne.s32.totalorder %s170, %s171
    %p182 = scmp.eq.s32.totalorder %s17, 0
    %p183 = por %p181, %p182
    %p184 = scmp.ne.s32.totalorder %s170, %s171
    %p185 = scmp.eq.s32.totalorder %s18, 3
    %p186 = por %p184, %p185
    %p188 = scmp.ne.s32.totalorder %s171, %s187
    %p189 = scmp.eq.s32.totalorder %s18, 0
    %p190 = por %p188, %p189
    %p191 = scmp.le.s32.totalorder 1, %s12
    %p192 = scmp.lt.s32.totalorder %s12, 5
    %p193 = pnand %p191, %p192
    %p194 = pneg %p193
    // Predicated region
    $region9: #{conv2d_n_rel.1} parent=5 // pred_check
      _
    $region10: #{conv2d_n_rel.1} parent=5 // pred_check_branch
      %196 = sbr.rel (%p193) target = $region12
    $region11: #{conv2d_n_rel.1} parent=5 // pred_region
      %s197 = ssub.s32 %s12, 1
      // Predicated region
      $region13: #{conv2d_n_rel.1} parent=11 // pred_check
        %p198 = pneg %p71
      $region14: #{conv2d_n_rel.1} parent=11 // pred_check_branch
        %200 = sbr.rel (%p198) target = $region16
      $region15: #{conv2d_n_rel.1} parent=11 // pred_region
        _
      $region16: #{conv2d_n_rel.1} parent=11 // pred_fallthru
        _
      // Predicated region
      $region17: #{conv2d_n_rel.1} parent=11 // pred_check
        %p201 = pneg %p92
      $region18: #{conv2d_n_rel.1} parent=11 // pred_check_branch
        %203 = sbr.rel (%p201) target = $region20
      $region19: #{conv2d_n_rel.1} parent=11 // pred_region
        _
      $region20: #{conv2d_n_rel.1} parent=11 // pred_fallthru
        _
      // Predicated region
      $region21: #{conv2d_n_rel.1} parent=11 // pred_check
        %p204 = pneg %p113
      $region22: #{conv2d_n_rel.1} parent=11 // pred_check_branch
        %206 = sbr.rel (%p204) target = $region24
      $region23: #{conv2d_n_rel.1} parent=11 // pred_region
        _
      $region24: #{conv2d_n_rel.1} parent=11 // pred_fallthru
        _
      // Predicated region
      $region25: #{conv2d_n_rel.1} parent=11 // pred_check
        %p207 = pneg %p134
      $region26: #{conv2d_n_rel.1} parent=11 // pred_check_branch
        %209 = sbr.rel (%p207) target = $region28
      $region27: #{conv2d_n_rel.1} parent=11 // pred_region
        _
      $region28: #{conv2d_n_rel.1} parent=11 // pred_fallthru
        _
      // Predicated region
      $region29: #{conv2d_n_rel.1} parent=11 // pred_check
        %p210 = pneg %p155
      $region30: #{conv2d_n_rel.1} parent=11 // pred_check_branch
        %212 = sbr.rel (%p210) target = $region32
      $region31: #{conv2d_n_rel.1} parent=11 // pred_region
        _
      $region32: #{conv2d_n_rel.1} parent=11 // pred_fallthru
        _
    $region12: #{conv2d_n_rel.1} parent=5 // pred_fallthru
      _
    %p213 = scmp.lt.s32.totalorder %s12, 4
    // Predicated region
    $region33: #{conv2d_n_rel.1} parent=5 // pred_check
      %p214 = pneg %p213
    $region34: #{conv2d_n_rel.1} parent=5 // pred_check_branch
      %216 = sbr.rel (%p214) target = $region36
    $region35: #{conv2d_n_rel.1} parent=5 // pred_region
      // Predicated region
      $region37: #{conv2d_n_rel.1} parent=35 // pred_check
        %p217 = pneg %p44
      $region38: #{conv2d_n_rel.1} parent=35 // pred_check_branch
        %219 = sbr.rel (%p217) target = $region40
      $region39: #{conv2d_n_rel.1} parent=35 // pred_region
        %s220 = smul.u32 3, %s20
        %p221 = scmp.lt.s32.totalorder %s220, 5
        %s222 = scalar_select %p221, %s220, 5
        %s223 = smul.addr %s222, 4
        %s224 = scalar_lea.vmem %s0, %s223
        %s225 = smul.u32 3, %s20
      $region40: #{conv2d_n_rel.1} parent=35 // pred_fallthru
        _
    $region36: #{conv2d_n_rel.1} parent=5 // pred_fallthru
      _
    %p226 = scmp.le.s32.totalorder 1, %s12
    %p227 = scmp.lt.s32.totalorder %s12, 5
    %p228 = pnand %p226, %p227
    %p229 = pneg %p228
    // Predicated region
    $region41: #{conv2d_n_rel.1} parent=5 // pred_check
      _
    $region42: #{conv2d_n_rel.1} parent=5 // pred_check_branch
      %231 = sbr.rel (%p228) target = $region44
    $region43: #{conv2d_n_rel.1} parent=5 // pred_region
      %s232 = ssub.s32 %s12, 1
      %s233 = smul.u32 3, %s22
      %p234 = scmp.lt.s32.totalorder %s233, 5
      %s235 = scalar_select %p234, %s233, 5
      %s236 = smul.addr %s235, 4
      %s237 = scalar_lea.vmem %s0, %s236
      %p238 = pneg %p50
      %p239 = pneg %p47
      %p240 = pneg %p71
      %p241 = pneg %p68
      %p242 = pneg %p92
      %p243 = pneg %p89
      %p244 = pneg %p113
      %p245 = pneg %p110
      %p246 = pneg %p134
      %p247 = pneg %p131
      %p248 = pneg %p155
      %p249 = pneg %p152
      %p250 = pneg %p183
      %p251 = pneg %p180
      %s252 = smul.u32 %s21, %s22
      %s253 = smul.u32 2, %s252
      %p254 = scmp.lt.s32.totalorder %s253, 3
      %s255 = scalar_select %p254, %s253, 3
      %s256 = smul.addr %s255, 8
      %s257 = scalar_lea.vmem %s6, %s256
      %s258 = smul.u32 3, %s22
      %p259 = scmp.lt.s32.totalorder %s258, 5
      %s260 = scalar_select %p259, %s258, 5
      %s261 = smul.addr %s260, 4
      %s262 = scalar_lea.vmem %s0, %s261
      %s263 = smul.u32 3, %s22
      %s264 = smul.u32 %s21, %s22
      %s265 = smul.u32 2, %s264
      %p266 = scmp.lt.s32.totalorder %s265, 3
      %s267 = scalar_select %p266, %s265, 3
      %s268 = smul.addr %s267, 8
      %s269 = scalar_lea.vmem %s6, %s268
      %s270 = smul.u32 %s21, %s22
      %s271 = smul.u32 2, %s270
      %p273 = scmp.eq.s32.totalorder %s21, 0
      // Predicated region
      $region45: #{conv2d_n_rel.1} parent=43 // pred_check
        %p274 = pneg %p273
      $region46: #{conv2d_n_rel.1} parent=43 // pred_check_branch
        %276 = sbr.rel (%p274) target = $region48
      $region47: #{conv2d_n_rel.1} parent=43 // pred_region
        %v277 = vld [vmem:[%s262] sm:$0xf]
        %v278 = vld [vmem:[%s262 + $0x4] sm:$0xf]
        %v279 = vld [vmem:[%s1] sm:$0xf]
        %v280 = vld [vmem:[%s1 + $0x4] sm:$0xf]
        %v281 = vld [vmem:[%s1 + $0x8] sm:$0xf]
        %v282 = vld [vmem:[%s1 + $0xc] sm:$0xf]
        %v283 = vld [vmem:[%s1 + $0x10] sm:$0xf]
        %v284 = vld [vmem:[%s1 + $0x14] sm:$0xf]
        %v285 = vld [vmem:[%s1 + $0x18] sm:$0xf]
        %v286 = vld [vmem:[%s1 + $0x1c] sm:$0xf]
        %v287 = vld [vmem:[%s1 + $0x20] sm:$0xf]
        %v288 = vld [vmem:[%s262 + $0x8] sm:$0x1]
        %s289 = scalar_lea.vmem %s1, 36
        %v290 = vld [vmem:[%s289] sm:$0xf]
        %v291 = vld [vmem:[%s289 + $0x4] sm:$0xf]
        %v292 = vld [vmem:[%s289 + $0x8] sm:$0xf]
        %v293 = vld [vmem:[%s289 + $0xc] sm:$0xf]
        %v294 = vld [vmem:[%s289 + $0x10] sm:$0xf]
        %v295 = vld [vmem:[%s289 + $0x14] sm:$0xf]
        %v296 = vld [vmem:[%s289 + $0x18] sm:$0xf]
        %v297 = vld [vmem:[%s289 + $0x1c] sm:$0xf]
        %v298 = vld [vmem:[%s289 + $0x20] sm:$0xf]
        %v302 = vunpack.c.l.b16 %v277
        %v303 = vunpack.c.l.b16 %v278
        %v304 = vunpack.c.l.b16 %v288
        %v305 = vpack.c.b16 %v303, %v302
        %v306 = vpack.c.b16 %v304, %v304
        %vm307 = vsmask.f32 7424
        %v309 = vshrl.u32 %v305, 16
        %v311 = vshll.u32 %v305, 16
        %v313 = vrot.slane %v311, 1
        %v314 = vor.u32 %v309, %v313
        %v316 = vshll.u32 %v306, 16
        %v318 = vrot.slane %v316, 1
        %v319 = vsel %vm307, %v314, %v318
        %v329 = vunpack.c.l.b16 %v290
        %v330 = vunpack.c.l.b16 %v291
        %v331 = vunpack.c.l.b16 %v292
        %v332 = vunpack.c.l.b16 %v293
        %v333 = vunpack.c.l.b16 %v294
        %v334 = vunpack.c.l.b16 %v295
        %v335 = vunpack.c.l.b16 %v296
        %v336 = vunpack.c.l.b16 %v297
        %v337 = vunpack.c.l.b16 %v298
        %v338 = vpack.c.b16 %v330, %v329
        %v339 = vpack.c.b16 %v332, %v331
        %v340 = vpack.c.b16 %v334, %v333
        %v341 = vpack.c.b16 %v336, %v335
        %v342 = vpack.c.b16 %v337, %v337
        %vm347 = vcmask 588800
        %v349 = vsel %vm347, %v319, 0
        %vm351 = vcmask 1043456
        %v353 = vsel %vm351, %v342, 0
        %355 = vmatprep.subr.bf16.mxu0 0
        %356 = vmatpush1.bf16.msra.mxu0 %v338
        %357 = vmatprep.subr.bf16.mxu0 0
        %358 = vmatpush1.bf16.msra.mxu0 %v339
        %359 = vmatprep.subr.bf16.mxu0 0
        %360 = vmatpush1.bf16.msra.mxu0 %v340
        %361 = vmatprep.subr.bf16.mxu0 0
        %362 = vmatpush1.bf16.msra.mxu0 %v341
        %363 = vmatprep.subr.bf16.mxu0 0
        %364 = vmatpush1.bf16.msra.mxu0 %v353
        %365 = vmatprep.subr.bf16.mxu0 0
        %366 = vmatpush1.bf16.msra.mxu0 0
        %367 = vmatprep.subr.bf16.mxu0 0
        %368 = vmatpush1.bf16.msra.mxu0 0
        %369 = vmatprep.subr.bf16.mxu0 0
        %370 = vmatpush1.bf16.msra.mxu0 0
        %371 = vmatprep.subr.bf16.mxu0 0
        %372 = vmatpush1.bf16.msra.mxu0 0
        %373 = vmatprep.subr.bf16.mxu0 0
        %374 = vmatpush1.bf16.msra.mxu0 0
        %375 = vmatprep.subr.bf16.mxu0 0
        %376 = vmatpush1.bf16.msra.mxu0 0
        %377 = vmatprep.subr.bf16.mxu0 0
        %378 = vmatpush1.bf16.msra.mxu0 0
        %379 = vmatprep.subr.bf16.mxu0 0
        %380 = vmatpush1.bf16.msra.mxu0 0
        %381 = vmatprep.subr.bf16.mxu0 0
        %382 = vmatpush1.bf16.msra.mxu0 0
        %383 = vmatprep.subr.bf16.mxu0 0
        %384 = vmatpush1.bf16.msra.mxu0 0
        %385 = vmatprep.subr.bf16.mxu0 0
        %386 = vmatpush1.bf16.msra.mxu0 0
        %387 = vmatprep.mubr.bf16.mxu0 0
        %388 = vmatmul.mubr.bf16.gmra.mrb[0].mxu0 %v349
        %v389 = vpop.f32.mrb[0].mxu0
        %v390 = vadd.f32 0.0, %v389
        %v391 = vpop.f32.mrb[0].mxu0
        %v392 = vpop.f32.mrb[0].mxu0
        %v393 = vadd.f32 0.0, %v392
        %v394 = vpop.f32.mrb[0].mxu0
        %395 = vdwg.mxu0
        %v405 = vunpack.c.l.b16 %v279
        %v406 = vunpack.c.l.b16 %v280
        %v407 = vunpack.c.l.b16 %v281
        %v408 = vunpack.c.l.b16 %v282
        %v409 = vunpack.c.l.b16 %v283
        %v410 = vunpack.c.l.b16 %v284
        %v411 = vunpack.c.l.b16 %v285
        %v412 = vunpack.c.l.b16 %v286
        %v413 = vunpack.c.l.b16 %v287
        %v414 = vpack.c.b16 %v406, %v405
        %v415 = vpack.c.b16 %v408, %v407
        %v416 = vpack.c.b16 %v410, %v409
        %v417 = vpack.c.b16 %v412, %v411
        %v418 = vpack.c.b16 %v413, %v413
        %v423 = vsel %vm347, %v305, 0
        %v426 = vsel %vm351, %v418, 0
        %428 = vmatprep.subr.bf16.mxu0 0
        %429 = vmatpush1.bf16.msra.mxu0 %v414
        %430 = vmatprep.subr.bf16.mxu0 0
        %431 = vmatpush1.bf16.msra.mxu0 %v415
        %432 = vmatprep.subr.bf16.mxu0 0
        %433 = vmatpush1.bf16.msra.mxu0 %v416
        %434 = vmatprep.subr.bf16.mxu0 0
        %435 = vmatpush1.bf16.msra.mxu0 %v417
        %436 = vmatprep.subr.bf16.mxu0 0
        %437 = vmatpush1.bf16.msra.mxu0 %v426
        %438 = vmatprep.subr.bf16.mxu0 0
        %439 = vmatpush1.bf16.msra.mxu0 0
        %440 = vmatprep.subr.bf16.mxu0 0
        %441 = vmatpush1.bf16.msra.mxu0 0
        %442 = vmatprep.subr.bf16.mxu0 0
        %443 = vmatpush1.bf16.msra.mxu0 0
        %444 = vmatprep.subr.bf16.mxu0 0
        %445 = vmatpush1.bf16.msra.mxu0 0
        %446 = vmatprep.subr.bf16.mxu0 0
        %447 = vmatpush1.bf16.msra.mxu0 0
        %448 = vmatprep.subr.bf16.mxu0 0
        %449 = vmatpush1.bf16.msra.mxu0 0
        %450 = vmatprep.subr.bf16.mxu0 0
        %451 = vmatpush1.bf16.msra.mxu0 0
        %452 = vmatprep.subr.bf16.mxu0 0
        %453 = vmatpush1.bf16.msra.mxu0 0
        %454 = vmatprep.subr.bf16.mxu0 0
        %455 = vmatpush1.bf16.msra.mxu0 0
        %456 = vmatprep.subr.bf16.mxu0 0
        %457 = vmatpush1.bf16.msra.mxu0 0
        %458 = vmatprep.subr.bf16.mxu0 0
        %459 = vmatpush1.bf16.msra.mxu0 0
        %460 = vmatprep.mubr.bf16.mxu0 0
        %461 = vmatmul.mubr.bf16.gmra.mrb[0].mxu0 %v423
        %v462 = vpop.f32.mrb[0].mxu0
        %v463 = vadd.f32 %v390, %v462
        %v464 = vpop.f32.mrb[0].mxu0
        %v465 = vpop.f32.mrb[0].mxu0
        %v466 = vadd.f32 %v393, %v465
        %v467 = vpop.f32.mrb[0].mxu0
        %468 = vdwg.mxu0
        %v469 = vld [vmem:[%s262] sm:$0xe]
        %s470 = scalar_lea.vmem %s1, 72
        %v471 = vld [vmem:[%s470] sm:$0xf]
        %v472 = vld [vmem:[%s470 + $0x4] sm:$0xf]
        %v473 = vld [vmem:[%s470 + $0x8] sm:$0xf]
        %v474 = vld [vmem:[%s470 + $0xc] sm:$0xf]
        %v475 = vld [vmem:[%s470 + $0x10] sm:$0xf]
        %v476 = vld [vmem:[%s470 + $0x14] sm:$0xf]
        %v477 = vld [vmem:[%s470 + $0x18] sm:$0xf]
        %v478 = vld [vmem:[%s470 + $0x1c] sm:$0xf]
        %v479 = vld [vmem:[%s470 + $0x20] sm:$0xf]
        %v481 = vunpack.c.l.b16 %v469
        %v482 = vpack.c.b16 %v303, %v481
        %vm483 = vcmask 1046528
        %v484 = vrot.slane %v482, 1
        %v485 = vrot.slane %v306, 1
        %v486 = vsel %vm483, %v484, %v485
        %v496 = vunpack.c.l.b16 %v471
        %v497 = vunpack.c.l.b16 %v472
        %v498 = vunpack.c.l.b16 %v473
        %v499 = vunpack.c.l.b16 %v474
        %v500 = vunpack.c.l.b16 %v475
        %v501 = vunpack.c.l.b16 %v476
        %v502 = vunpack.c.l.b16 %v477
        %v503 = vunpack.c.l.b16 %v478
        %v504 = vunpack.c.l.b16 %v479
        %v505 = vpack.c.b16 %v497, %v496
        %v506 = vpack.c.b16 %v499, %v498
        %v507 = vpack.c.b16 %v501, %v500
        %v508 = vpack.c.b16 %v503, %v502
        %v509 = vpack.c.b16 %v504, %v504
        %v515 = vsel %vm347, %v486, 0
        %v518 = vsel %vm351, %v509, 0
        %520 = vmatprep.subr.bf16.mxu0 0
        %521 = vmatpush1.bf16.msra.mxu0 %v505
        %522 = vmatprep.subr.bf16.mxu0 0
        %523 = vmatpush1.bf16.msra.mxu0 %v506
        %524 = vmatprep.subr.bf16.mxu0 0
        %525 = vmatpush1.bf16.msra.mxu0 %v507
        %526 = vmatprep.subr.bf16.mxu0 0
        %527 = vmatpush1.bf16.msra.mxu0 %v508
        %528 = vmatprep.subr.bf16.mxu0 0
        %529 = vmatpush1.bf16.msra.mxu0 %v518
        %530 = vmatprep.subr.bf16.mxu0 0
        %531 = vmatpush1.bf16.msra.mxu0 0
        %532 = vmatprep.subr.bf16.mxu0 0
        %533 = vmatpush1.bf16.msra.mxu0 0
        %534 = vmatprep.subr.bf16.mxu0 0
        %535 = vmatpush1.bf16.msra.mxu0 0
        %536 = vmatprep.subr.bf16.mxu0 0
        %537 = vmatpush1.bf16.msra.mxu0 0
        %538 = vmatprep.subr.bf16.mxu0 0
        %539 = vmatpush1.bf16.msra.mxu0 0
        %540 = vmatprep.subr.bf16.mxu0 0
        %541 = vmatpush1.bf16.msra.mxu0 0
        %542 = vmatprep.subr.bf16.mxu0 0
        %543 = vmatpush1.bf16.msra.mxu0 0
        %544 = vmatprep.subr.bf16.mxu0 0
        %545 = vmatpush1.bf16.msra.mxu0 0
        %546 = vmatprep.subr.bf16.mxu0 0
        %547 = vmatpush1.bf16.msra.mxu0 0
        %548 = vmatprep.subr.bf16.mxu0 0
        %549 = vmatpush1.bf16.msra.mxu0 0
        %550 = vmatprep.subr.bf16.mxu0 0
        %551 = vmatpush1.bf16.msra.mxu0 0
        %552 = vmatprep.mubr.bf16.mxu0 0
        %553 = vmatmul.mubr.bf16.gmra.mrb[0].mxu0 %v515
        %v554 = vpop.f32.mrb[0].mxu0
        %v555 = vadd.f32 0.0, %v554
        %v556 = vpop.f32.mrb[0].mxu0
        %v557 = vpop.f32.mrb[0].mxu0
        %v558 = vadd.f32 0.0, %v557
        %v559 = vpop.f32.mrb[0].mxu0
        %560 = vdwg.mxu0
        %v561 = vadd.f32 %v463, %v555
        %v562 = vadd.f32 %v466, %v558
        %p563 = scmp.eq.s32.totalorder %s22, 0
        // Predicated region
        $region49: #{conv2d_n_rel.1} parent=47 // pred_check
          %p564 = pneg %p563
        $region50: #{conv2d_n_rel.1} parent=47 // pred_check_branch
          %566 = sbr.rel (%p564) target = $region52
        $region51: #{conv2d_n_rel.1} parent=47 // pred_region
          %v567 = vadd.f32 %v561, %v562
          %v568 = vrot.slane %v567, 4
          %v569 = vadd.f32 %v567, %v568
          %v570 = vrot.slane %v569, 2
          %v571 = vadd.f32 %v569, %v570
          %v572 = vrot.slane %v571, 1
          %v573 = vadd.f32 %v571, %v572
          %v574 = vld [vmem:[%s2] sm:$0xff]
          %v575 = vld [vmem:[%s2 + $0x8] sm:$0xff]
          %v576 = vld [vmem:[%s2 + $0x10] sm:$0xff]
          %v577 = vld [vmem:[%s2 + $0x18] sm:$0xff]
          %v578 = vld [vmem:[%s2 + $0x20] sm:$0xff]
          %v579 = vld [vmem:[%s2 + $0x28] sm:$0xff]
          %v580 = vld [vmem:[%s2 + $0x30] sm:$0xff]
          %v581 = vld [vmem:[%s2 + $0x38] sm:$0xff]
          %v582 = vld [vmem:[%s2 + $0x40] sm:$0xff]
          %v583 = vld [vmem:[%s2 + $0x48] sm:$0xff]
          %v584 = vld [vmem:[%s2 + $0x50] sm:$0xff]
          %v585 = vld [vmem:[%s2 + $0x58] sm:$0xff]
          %v586 = vld [vmem:[%s2 + $0x60] sm:$0xff]
          %v587 = vld [vmem:[%s2 + $0x68] sm:$0xff]
          %v588 = vld [vmem:[%s2 + $0x70] sm:$0xff]
          %v589 = vld [vmem:[%s2 + $0x78] sm:$0xff]
          %590 = vmatprep.subr.mxu0 0.0
          %591 = vmatpush1.msra.mxu0 %v574
          %592 = vmatprep.subr.mxu0 0.0
          %593 = vmatpush1.msra.mxu0 %v575
          %594 = vmatprep.subr.mxu0 0.0
          %595 = vmatpush1.msra.mxu0 %v576
          %596 = vmatprep.subr.mxu0 0.0
          %597 = vmatpush1.msra.mxu0 %v577
          %598 = vmatprep.subr.mxu0 0.0
          %599 = vmatpush1.msra.mxu0 %v578
          %600 = vmatprep.subr.mxu0 0.0
          %601 = vmatpush1.msra.mxu0 %v579
          %602 = vmatprep.subr.mxu0 0.0
          %603 = vmatpush1.msra.mxu0 %v580
          %604 = vmatprep.subr.mxu0 0.0
          %605 = vmatpush1.msra.mxu0 %v581
          %606 = vmatprep.subr.mxu0 0.0
          %607 = vmatpush1.msra.mxu0 %v582
          %608 = vmatprep.subr.mxu0 0.0
          %609 = vmatpush1.msra.mxu0 %v583
          %610 = vmatprep.subr.mxu0 0.0
          %611 = vmatpush1.msra.mxu0 %v584
          %612 = vmatprep.subr.mxu0 0.0
          %613 = vmatpush1.msra.mxu0 %v585
          %614 = vmatprep.subr.mxu0 0.0
          %615 = vmatpush1.msra.mxu0 %v586
          %616 = vmatprep.subr.mxu0 0.0
          %617 = vmatpush1.msra.mxu0 %v587
          %618 = vmatprep.subr.mxu0 0.0
          %619 = vmatpush1.msra.mxu0 %v588
          %620 = vmatprep.subr.mxu0 0.0
          %621 = vmatpush1.msra.mxu0 %v589
          %622 = vmatprep.subr.mxu0 0.0
          %623 = vmatpush1.msra.mxu0 0.0
          %624 = vmatprep.subr.mxu0 0.0
          %625 = vmatpush1.msra.mxu0 0.0
          %626 = vmatprep.subr.mxu0 0.0
          %627 = vmatpush1.msra.mxu0 0.0
          %628 = vmatprep.subr.mxu0 0.0
          %629 = vmatpush1.msra.mxu0 0.0
          %630 = vmatprep.subr.mxu0 0.0
          %631 = vmatpush1.msra.mxu0 0.0
          %632 = vmatprep.subr.mxu0 0.0
          %633 = vmatpush1.msra.mxu0 0.0
          %634 = vmatprep.subr.mxu0 0.0
          %635 = vmatpush1.msra.mxu0 0.0
          %636 = vmatprep.subr.mxu0 0.0
          %637 = vmatpush1.msra.mxu0 0.0
          %638 = vmatprep.subr.mxu0 0.0
          %639 = vmatpush1.msra.mxu0 0.0
          %640 = vmatprep.subr.mxu0 0.0
          %641 = vmatpush1.msra.mxu0 0.0
          %642 = vmatprep.subr.mxu0 0.0
          %643 = vmatpush1.msra.mxu0 0.0
          %644 = vmatprep.subr.mxu0 0.0
          %645 = vmatpush1.msra.mxu0 0.0
          %646 = vmatprep.subr.mxu0 0.0
          %647 = vmatpush1.msra.mxu0 0.0
          %648 = vmatprep.subr.mxu0 0.0
          %649 = vmatpush1.msra.mxu0 0.0
          %650 = vmatprep.subr.mxu0 0.0
          %651 = vmatpush1.msra.mxu0 0.0
          %652 = vmatprep.subr.mxu0 0.0
          %653 = vmatpush1.msra.mxu0 0.0
          %654 = vmatprep.mubr.f32.mxu0 0.0
          %655 = vmatmul.mubr.f32.gmra.mrb[0].mxu0 %v573
          %v656 = vpop.f32.mrb[0].mxu0
          %v657 = vadd.f32 0.0, %v656
          %v658 = vpop.f32.mrb[0].mxu0
          %659 = vdwg.mxu0
          %v660 = vmul.f32 %v657, 0.00390625
          %661 = vst [vmem:[#allocation2 + $0x5] sm:$0x1] %v660
          %v662 = vld [vmem:[%s3] sm:$0xff]
          %v663 = vld [vmem:[%s3 + $0x8] sm:$0xff]
          %v664 = vld [vmem:[%s3 + $0x10] sm:$0xff]
          %v665 = vld [vmem:[%s3 + $0x18] sm:$0xff]
          %v666 = vld [vmem:[%s3 + $0x20] sm:$0xff]
          %v667 = vld [vmem:[%s3 + $0x28] sm:$0xff]
          %v668 = vld [vmem:[%s3 + $0x30] sm:$0xff]
          %v669 = vld [vmem:[%s3 + $0x38] sm:$0xff]
          %v670 = vld [vmem:[%s3 + $0x40] sm:$0xff]
          %v671 = vld [vmem:[%s3 + $0x48] sm:$0xff]
          %v672 = vld [vmem:[%s3 + $0x50] sm:$0xff]
          %v673 = vld [vmem:[%s3 + $0x58] sm:$0xff]
          %v674 = vld [vmem:[%s3 + $0x60] sm:$0xff]
          %v675 = vld [vmem:[%s3 + $0x68] sm:$0xff]
          %v676 = vld [vmem:[%s3 + $0x70] sm:$0xff]
          %v677 = vld [vmem:[%s3 + $0x78] sm:$0xff]
          %678 = vmatprep.subr.mxu0 0.0
          %679 = vmatpush1.msra.mxu0 %v662
          %680 = vmatprep.subr.mxu0 0.0
          %681 = vmatpush1.msra.mxu0 %v663
          %682 = vmatprep.subr.mxu0 0.0
          %683 = vmatpush1.msra.mxu0 %v664
          %684 = vmatprep.subr.mxu0 0.0
          %685 = vmatpush1.msra.mxu0 %v665
          %686 = vmatprep.subr.mxu0 0.0
          %687 = vmatpush1.msra.mxu0 %v666
          %688 = vmatprep.subr.mxu0 0.0
          %689 = vmatpush1.msra.mxu0 %v667
          %690 = vmatprep.subr.mxu0 0.0
          %691 = vmatpush1.msra.mxu0 %v668
          %692 = vmatprep.subr.mxu0 0.0
          %693 = vmatpush1.msra.mxu0 %v669
          %694 = vmatprep.subr.mxu0 0.0
          %695 = vmatpush1.msra.mxu0 %v670
          %696 = vmatprep.subr.mxu0 0.0
          %697 = vmatpush1.msra.mxu0 %v671
          %698 = vmatprep.subr.mxu0 0.0
          %699 = vmatpush1.msra.mxu0 %v672
          %700 = vmatprep.subr.mxu0 0.0
          %701 = vmatpush1.msra.mxu0 %v673
          %702 = vmatprep.subr.mxu0 0.0
          %703 = vmatpush1.msra.mxu0 %v674
          %704 = vmatprep.subr.mxu0 0.0
          %705 = vmatpush1.msra.mxu0 %v675
          %706 = vmatprep.subr.mxu0 0.0
          %707 = vmatpush1.msra.mxu0 %v676
          %708 = vmatprep.subr.mxu0 0.0
          %709 = vmatpush1.msra.mxu0 %v677
          %710 = vmatprep.subr.mxu0 0.0
          %711 = vmatpush1.msra.mxu0 0.0
          %712 = vmatprep.subr.mxu0 0.0
          %713 = vmatpush1.msra.mxu0 0.0
          %714 = vmatprep.subr.mxu0 0.0
          %715 = vmatpush1.msra.mxu0 0.0
          %716 = vmatprep.subr.mxu0 0.0
          %717 = vmatpush1.msra.mxu0 0.0
          %718 = vmatprep.subr.mxu0 0.0
          %719 = vmatpush1.msra.mxu0 0.0
          %720 = vmatprep.subr.mxu0 0.0
          %721 = vmatpush1.msra.mxu0 0.0
          %722 = vmatprep.subr.mxu0 0.0
          %723 = vmatpush1.msra.mxu0 0.0
          %724 = vmatprep.subr.mxu0 0.0
          %725 = vmatpush1.msra.mxu0 0.0
          %726 = vmatprep.subr.mxu0 0.0
          %727 = vmatpush1.msra.mxu0 0.0
          %728 = vmatprep.subr.mxu0 0.0
          %729 = vmatpush1.msra.mxu0 0.0
          %730 = vmatprep.subr.mxu0 0.0
          %731 = vmatpush1.msra.mxu0 0.0
          %732 = vmatprep.subr.mxu0 0.0
          %733 = vmatpush1.msra.mxu0 0.0
          %734 = vmatprep.subr.mxu0 0.0
          %735 = vmatpush1.msra.mxu0 0.0
          %736 = vmatprep.subr.mxu0 0.0
          %737 = vmatpush1.msra.mxu0 0.0
          %738 = vmatprep.subr.mxu0 0.0
          %739 = vmatpush1.msra.mxu0 0.0
          %740 = vmatprep.subr.mxu0 0.0
          %741 = vmatpush1.msra.mxu0 0.0
          %742 = vmatprep.mubr.f32.mxu0 0.0
          %743 = vmatmul.mubr.f32.gmra.mrb[0].mxu0 %v660
          %v744 = vpop.f32.mrb[0].mxu0
          %v745 = vadd.f32 0.0, %v744
          %v746 = vpop.f32.mrb[0].mxu0
          %747 = vdwg.mxu0
          %748 = vst [vmem:[#allocation2 + $0x2] sm:$0x1] %v745
          %749 = vst [vmem:[#allocation2] sm:$0x3] 0.0
        $region52: #{conv2d_n_rel.1} parent=47 // pred_fallthru
          _
        %v750 = vld [vmem:[#allocation2 + $0x2] sm:$0x1]
        %v751 = vlaneseq
        %v752 = vshrl.u32 %v751, 7
        %v753 = vsub.s32 0, %v752
        %v754 = vrot.slane %v750, %v753
        %v755 = vsub.f32 %v561, %v754
        %v756 = vsub.f32 %v562, %v754
        %v757 = vld [vmem:[#allocation2] sm:$0x1]
        %v758 = vadd.f32 %v755, %v756
        %v759 = vrot.slane %v758, 4
        %v760 = vadd.f32 %v758, %v759
        %v761 = vrot.slane %v760, 2
        %v762 = vadd.f32 %v760, %v761
        %v763 = vrot.slane %v762, 1
        %v764 = vadd.f32 %v762, %v763
        %v765 = vadd.f32 %v757, %v764
        %766 = vst [vmem:[#allocation2] sm:$0x1] %v765
        %v767 = vld [vmem:[#allocation2 + $0x1] sm:$0x1]
        %v768 = vmul.f32 %v755, %v755
        %v769 = vmul.f32 %v756, %v756
        %v770 = vadd.f32 %v768, %v769
        %v771 = vrot.slane %v770, 4
        %v772 = vadd.f32 %v770, %v771
        %v773 = vrot.slane %v772, 2
        %v774 = vadd.f32 %v772, %v773
        %v775 = vrot.slane %v774, 1
        %v776 = vadd.f32 %v774, %v775
        %v777 = vadd.f32 %v767, %v776
        %778 = vst [vmem:[#allocation2 + $0x1] sm:$0x1] %v777
      $region48: #{conv2d_n_rel.1} parent=43 // pred_fallthru
        _
      %p779 = scmp.eq.s32.totalorder %s21, 1
      // Predicated region
      $region53: #{conv2d_n_rel.1} parent=43 // pred_check
        %p780 = pneg %p779
      $region54: #{conv2d_n_rel.1} parent=43 // pred_check_branch
        %782 = sbr.rel (%p780) target = $region56
      $region55: #{conv2d_n_rel.1} parent=43 // pred_region
        %p783 = scmp.eq.s32.totalorder %s22, 0
        // Predicated region
        $region57: #{conv2d_n_rel.1} parent=55 // pred_check
          %p784 = pneg %p783
        $region58: #{conv2d_n_rel.1} parent=55 // pred_check_branch
          %786 = sbr.rel (%p784) target = $region60
        $region59: #{conv2d_n_rel.1} parent=55 // pred_region
          %v787 = vld [vmem:[#allocation2] sm:$0x1]
          %v788 = vld [vmem:[%s2] sm:$0xff]
          %v789 = vld [vmem:[%s2 + $0x8] sm:$0xff]
          %v790 = vld [vmem:[%s2 + $0x10] sm:$0xff]
          %v791 = vld [vmem:[%s2 + $0x18] sm:$0xff]
          %v792 = vld [vmem:[%s2 + $0x20] sm:$0xff]
          %v793 = vld [vmem:[%s2 + $0x28] sm:$0xff]
          %v794 = vld [vmem:[%s2 + $0x30] sm:$0xff]
          %v795 = vld [vmem:[%s2 + $0x38] sm:$0xff]
          %v796 = vld [vmem:[%s2 + $0x40] sm:$0xff]
          %v797 = vld [vmem:[%s2 + $0x48] sm:$0xff]
          %v798 = vld [vmem:[%s2 + $0x50] sm:$0xff]
          %v799 = vld [vmem:[%s2 + $0x58] sm:$0xff]
          %v800 = vld [vmem:[%s2 + $0x60] sm:$0xff]
          %v801 = vld [vmem:[%s2 + $0x68] sm:$0xff]
          %v802 = vld [vmem:[%s2 + $0x70] sm:$0xff]
          %v803 = vld [vmem:[%s2 + $0x78] sm:$0xff]
          %804 = vmatprep.subr.mxu0 0.0
          %805 = vmatpush1.msra.mxu0 %v788
          %806 = vmatprep.subr.mxu0 0.0
          %807 = vmatpush1.msra.mxu0 %v789
          %808 = vmatprep.subr.mxu0 0.0
          %809 = vmatpush1.msra.mxu0 %v790
          %810 = vmatprep.subr.mxu0 0.0
          %811 = vmatpush1.msra.mxu0 %v791
          %812 = vmatprep.subr.mxu0 0.0
          %813 = vmatpush1.msra.mxu0 %v792
          %814 = vmatprep.subr.mxu0 0.0
          %815 = vmatpush1.msra.mxu0 %v793
          %816 = vmatprep.subr.mxu0 0.0
          %817 = vmatpush1.msra.mxu0 %v794
          %818 = vmatprep.subr.mxu0 0.0
          %819 = vmatpush1.msra.mxu0 %v795
          %820 = vmatprep.subr.mxu0 0.0
          %821 = vmatpush1.msra.mxu0 %v796
          %822 = vmatprep.subr.mxu0 0.0
          %823 = vmatpush1.msra.mxu0 %v797
          %824 = vmatprep.subr.mxu0 0.0
          %825 = vmatpush1.msra.mxu0 %v798
          %826 = vmatprep.subr.mxu0 0.0
          %827 = vmatpush1.msra.mxu0 %v799
          %828 = vmatprep.subr.mxu0 0.0
          %829 = vmatpush1.msra.mxu0 %v800
          %830 = vmatprep.subr.mxu0 0.0
          %831 = vmatpush1.msra.mxu0 %v801
          %832 = vmatprep.subr.mxu0 0.0
          %833 = vmatpush1.msra.mxu0 %v802
          %834 = vmatprep.subr.mxu0 0.0
          %835 = vmatpush1.msra.mxu0 %v803
          %836 = vmatprep.subr.mxu0 0.0
          %837 = vmatpush1.msra.mxu0 0.0
          %838 = vmatprep.subr.mxu0 0.0
          %839 = vmatpush1.msra.mxu0 0.0
          %840 = vmatprep.subr.mxu0 0.0
          %841 = vmatpush1.msra.mxu0 0.0
          %842 = vmatprep.subr.mxu0 0.0
          %843 = vmatpush1.msra.mxu0 0.0
          %844 = vmatprep.subr.mxu0 0.0
          %845 = vmatpush1.msra.mxu0 0.0
          %846 = vmatprep.subr.mxu0 0.0
          %847 = vmatpush1.msra.mxu0 0.0
          %848 = vmatprep.subr.mxu0 0.0
          %849 = vmatpush1.msra.mxu0 0.0
          %850 = vmatprep.subr.mxu0 0.0
          %851 = vmatpush1.msra.mxu0 0.0
          %852 = vmatprep.subr.mxu0 0.0
          %853 = vmatpush1.msra.mxu0 0.0
          %854 = vmatprep.subr.mxu0 0.0
          %855 = vmatpush1.msra.mxu0 0.0
          %856 = vmatprep.subr.mxu0 0.0
          %857 = vmatpush1.msra.mxu0 0.0
          %858 = vmatprep.subr.mxu0 0.0
          %859 = vmatpush1.msra.mxu0 0.0
          %860 = vmatprep.subr.mxu0 0.0
          %861 = vmatpush1.msra.mxu0 0.0
          %862 = vmatprep.subr.mxu0 0.0
          %863 = vmatpush1.msra.mxu0 0.0
          %864 = vmatprep.subr.mxu0 0.0
          %865 = vmatpush1.msra.mxu0 0.0
          %866 = vmatprep.subr.mxu0 0.0
          %867 = vmatpush1.msra.mxu0 0.0
          %868 = vmatprep.mubr.f32.mxu0 0.0
          %869 = vmatmul.mubr.f32.gmra.mrb[0].mxu0 %v787
          %v870 = vpop.f32.mrb[0].mxu0
          %v871 = vadd.f32 0.0, %v870
          %v872 = vpop.f32.mrb[0].mxu0
          %873 = vdwg.mxu0
          %v874 = vmul.f32 %v871, 0.001953125
          %v875 = vld [vmem:[#allocation2 + $0x1] sm:$0x1]
          %876 = vmatprep.subr.mxu0 0.0
          %877 = vmatpush1.msra.mxu0 %v788
          %878 = vmatprep.subr.mxu0 0.0
          %879 = vmatpush1.msra.mxu0 %v789
          %880 = vmatprep.subr.mxu0 0.0
          %881 = vmatpush1.msra.mxu0 %v790
          %882 = vmatprep.subr.mxu0 0.0
          %883 = vmatpush1.msra.mxu0 %v791
          %884 = vmatprep.subr.mxu0 0.0
          %885 = vmatpush1.msra.mxu0 %v792
          %886 = vmatprep.subr.mxu0 0.0
          %887 = vmatpush1.msra.mxu0 %v793
          %888 = vmatprep.subr.mxu0 0.0
          %889 = vmatpush1.msra.mxu0 %v794
          %890 = vmatprep.subr.mxu0 0.0
          %891 = vmatpush1.msra.mxu0 %v795
          %892 = vmatprep.subr.mxu0 0.0
          %893 = vmatpush1.msra.mxu0 %v796
          %894 = vmatprep.subr.mxu0 0.0
          %895 = vmatpush1.msra.mxu0 %v797
          %896 = vmatprep.subr.mxu0 0.0
          %897 = vmatpush1.msra.mxu0 %v798
          %898 = vmatprep.subr.mxu0 0.0
          %899 = vmatpush1.msra.mxu0 %v799
          %900 = vmatprep.subr.mxu0 0.0
          %901 = vmatpush1.msra.mxu0 %v800
          %902 = vmatprep.subr.mxu0 0.0
          %903 = vmatpush1.msra.mxu0 %v801
          %904 = vmatprep.subr.mxu0 0.0
          %905 = vmatpush1.msra.mxu0 %v802
          %906 = vmatprep.subr.mxu0 0.0
          %907 = vmatpush1.msra.mxu0 %v803
          %908 = vmatprep.subr.mxu0 0.0
          %909 = vmatpush1.msra.mxu0 0.0
          %910 = vmatprep.subr.mxu0 0.0
          %911 = vmatpush1.msra.mxu0 0.0
          %912 = vmatprep.subr.mxu0 0.0
          %913 = vmatpush1.msra.mxu0 0.0
          %914 = vmatprep.subr.mxu0 0.0
          %915 = vmatpush1.msra.mxu0 0.0
          %916 = vmatprep.subr.mxu0 0.0
          %917 = vmatpush1.msra.mxu0 0.0
          %918 = vmatprep.subr.mxu0 0.0
          %919 = vmatpush1.msra.mxu0 0.0
          %920 = vmatprep.subr.mxu0 0.0
          %921 = vmatpush1.msra.mxu0 0.0
          %922 = vmatprep.subr.mxu0 0.0
          %923 = vmatpush1.msra.mxu0 0.0
          %924 = vmatprep.subr.mxu0 0.0
          %925 = vmatpush1.msra.mxu0 0.0
          %926 = vmatprep.subr.mxu0 0.0
          %927 = vmatpush1.msra.mxu0 0.0
          %928 = vmatprep.subr.mxu0 0.0
          %929 = vmatpush1.msra.mxu0 0.0
          %930 = vmatprep.subr.mxu0 0.0
          %931 = vmatpush1.msra.mxu0 0.0
          %932 = vmatprep.subr.mxu0 0.0
          %933 = vmatpush1.msra.mxu0 0.0
          %934 = vmatprep.subr.mxu0 0.0
          %935 = vmatpush1.msra.mxu0 0.0
          %936 = vmatprep.subr.mxu0 0.0
          %937 = vmatpush1.msra.mxu0 0.0
          %938 = vmatprep.subr.mxu0 0.0
          %939 = vmatpush1.msra.mxu0 0.0
          %940 = vmatprep.mubr.f32.mxu0 0.0
          %941 = vmatmul.mubr.f32.gmra.mrb[0].mxu0 %v875
          %v942 = vpop.f32.mrb[0].mxu0
          %v943 = vadd.f32 0.0, %v942
          %v944 = vpop.f32.mrb[0].mxu0
          %945 = vdwg.mxu0
          %v946 = vmul.f32 %v943, 0.001953125
          %v947 = vld [vmem:[#allocation2 + $0x5] sm:$0x1]
          %v948 = vadd.f32 %v947, %v874
          %v949 = vmul.f32 %v874, %v874
          %v950 = vsub.f32 %v946, %v949
          %v951 = vld [vmem:[%s4] sm:$0x1]
          %v952 = vadd.f32 %v950, 1e-05
          %v953 = vrsqrt.pop %v952
          %v954 = vmul.f32 %v951, %v953
          %v955 = vld [vmem:[%s5] sm:$0x1]
          %v956 = vmul.f32 %v948, %v954
          %v957 = vsub.f32 %v955, %v956
          %v958 = vld [vmem:[%s3] sm:$0xff]
          %v959 = vld [vmem:[%s3 + $0x8] sm:$0xff]
          %v960 = vld [vmem:[%s3 + $0x10] sm:$0xff]
          %v961 = vld [vmem:[%s3 + $0x18] sm:$0xff]
          %v962 = vld [vmem:[%s3 + $0x20] sm:$0xff]
          %v963 = vld [vmem:[%s3 + $0x28] sm:$0xff]
          %v964 = vld [vmem:[%s3 + $0x30] sm:$0xff]
          %v965 = vld [vmem:[%s3 + $0x38] sm:$0xff]
          %v966 = vld [vmem:[%s3 + $0x40] sm:$0xff]
          %v967 = vld [vmem:[%s3 + $0x48] sm:$0xff]
          %v968 = vld [vmem:[%s3 + $0x50] sm:$0xff]
          %v969 = vld [vmem:[%s3 + $0x58] sm:$0xff]
          %v970 = vld [vmem:[%s3 + $0x60] sm:$0xff]
          %v971 = vld [vmem:[%s3 + $0x68] sm:$0xff]
          %v972 = vld [vmem:[%s3 + $0x70] sm:$0xff]
          %v973 = vld [vmem:[%s3 + $0x78] sm:$0xff]
          %974 = vmatprep.subr.mxu0 0.0
          %975 = vmatpush1.msra.mxu0 %v958
          %976 = vmatprep.subr.mxu0 0.0
          %977 = vmatpush1.msra.mxu0 %v959
          %978 = vmatprep.subr.mxu0 0.0
          %979 = vmatpush1.msra.mxu0 %v960
          %980 = vmatprep.subr.mxu0 0.0
          %981 = vmatpush1.msra.mxu0 %v961
          %982 = vmatprep.subr.mxu0 0.0
          %983 = vmatpush1.msra.mxu0 %v962
          %984 = vmatprep.subr.mxu0 0.0
          %985 = vmatpush1.msra.mxu0 %v963
          %986 = vmatprep.subr.mxu0 0.0
          %987 = vmatpush1.msra.mxu0 %v964
          %988 = vmatprep.subr.mxu0 0.0
          %989 = vmatpush1.msra.mxu0 %v965
          %990 = vmatprep.subr.mxu0 0.0
          %991 = vmatpush1.msra.mxu0 %v966
          %992 = vmatprep.subr.mxu0 0.0
          %993 = vmatpush1.msra.mxu0 %v967
          %994 = vmatprep.subr.mxu0 0.0
          %995 = vmatpush1.msra.mxu0 %v968
          %996 = vmatprep.subr.mxu0 0.0
          %997 = vmatpush1.msra.mxu0 %v969
          %998 = vmatprep.subr.mxu0 0.0
          %999 = vmatpush1.msra.mxu0 %v970
          %1000 = vmatprep.subr.mxu0 0.0
          %1001 = vmatpush1.msra.mxu0 %v971
          %1002 = vmatprep.subr.mxu0 0.0
          %1003 = vmatpush1.msra.mxu0 %v972
          %1004 = vmatprep.subr.mxu0 0.0
          %1005 = vmatpush1.msra.mxu0 %v973
          %1006 = vmatprep.subr.mxu0 0.0
          %1007 = vmatpush1.msra.mxu0 0.0
          %1008 = vmatprep.subr.mxu0 0.0
          %1009 = vmatpush1.msra.mxu0 0.0
          %1010 = vmatprep.subr.mxu0 0.0
          %1011 = vmatpush1.msra.mxu0 0.0
          %1012 = vmatprep.subr.mxu0 0.0
          %1013 = vmatpush1.msra.mxu0 0.0
          %1014 = vmatprep.subr.mxu0 0.0
          %1015 = vmatpush1.msra.mxu0 0.0
          %1016 = vmatprep.subr.mxu0 0.0
          %1017 = vmatpush1.msra.mxu0 0.0
          %1018 = vmatprep.subr.mxu0 0.0
          %1019 = vmatpush1.msra.mxu0 0.0
          %1020 = vmatprep.subr.mxu0 0.0
          %1021 = vmatpush1.msra.mxu0 0.0
          %1022 = vmatprep.subr.mxu0 0.0
          %1023 = vmatpush1.msra.mxu0 0.0
          %1024 = vmatprep.subr.mxu0 0.0
          %1025 = vmatpush1.msra.mxu0 0.0
          %1026 = vmatprep.subr.mxu0 0.0
          %1027 = vmatpush1.msra.mxu0 0.0
          %1028 = vmatprep.subr.mxu0 0.0
          %1029 = vmatpush1.msra.mxu0 0.0
          %1030 = vmatprep.subr.mxu0 0.0
          %1031 = vmatpush1.msra.mxu0 0.0
          %1032 = vmatprep.subr.mxu0 0.0
          %1033 = vmatpush1.msra.mxu0 0.0
          %1034 = vmatprep.subr.mxu0 0.0
          %1035 = vmatpush1.msra.mxu0 0.0
          %1036 = vmatprep.subr.mxu0 0.0
          %1037 = vmatpush1.msra.mxu0 0.0
          %1038 = vmatprep.mubr.f32.mxu0 0.0
          %1039 = vmatmul.mubr.f32.gmra.mrb[0].mxu0 %v954
          %v1040 = vpop.f32.mrb[0].mxu0
          %v1041 = vadd.f32 0.0, %v1040
          %v1042 = vpop.f32.mrb[0].mxu0
          %1043 = vdwg.mxu0
          %1044 = vst [vmem:[#allocation2 + $0x3] sm:$0x1] %v1041
          %v1045 = vld [vmem:[%s3] sm:$0xff]
          %v1046 = vld [vmem:[%s3 + $0x8] sm:$0xff]
          %v1047 = vld [vmem:[%s3 + $0x10] sm:$0xff]
          %v1048 = vld [vmem:[%s3 + $0x18] sm:$0xff]
          %v1049 = vld [vmem:[%s3 + $0x20] sm:$0xff]
          %v1050 = vld [vmem:[%s3 + $0x28] sm:$0xff]
          %v1051 = vld [vmem:[%s3 + $0x30] sm:$0xff]
          %v1052 = vld [vmem:[%s3 + $0x38] sm:$0xff]
          %v1053 = vld [vmem:[%s3 + $0x40] sm:$0xff]
          %v1054 = vld [vmem:[%s3 + $0x48] sm:$0xff]
          %v1055 = vld [vmem:[%s3 + $0x50] sm:$0xff]
          %v1056 = vld [vmem:[%s3 + $0x58] sm:$0xff]
          %v1057 = vld [vmem:[%s3 + $0x60] sm:$0xff]
          %v1058 = vld [vmem:[%s3 + $0x68] sm:$0xff]
          %v1059 = vld [vmem:[%s3 + $0x70] sm:$0xff]
          %v1060 = vld [vmem:[%s3 + $0x78] sm:$0xff]
          %1061 = vmatprep.subr.mxu0 0.0
          %1062 = vmatpush1.msra.mxu0 %v1045
          %1063 = vmatprep.subr.mxu0 0.0
          %1064 = vmatpush1.msra.mxu0 %v1046
          %1065 = vmatprep.subr.mxu0 0.0
          %1066 = vmatpush1.msra.mxu0 %v1047
          %1067 = vmatprep.subr.mxu0 0.0
          %1068 = vmatpush1.msra.mxu0 %v1048
          %1069 = vmatprep.subr.mxu0 0.0
          %1070 = vmatpush1.msra.mxu0 %v1049
          %1071 = vmatprep.subr.mxu0 0.0
          %1072 = vmatpush1.msra.mxu0 %v1050
          %1073 = vmatprep.subr.mxu0 0.0
          %1074 = vmatpush1.msra.mxu0 %v1051
          %1075 = vmatprep.subr.mxu0 0.0
          %1076 = vmatpush1.msra.mxu0 %v1052
          %1077 = vmatprep.subr.mxu0 0.0
          %1078 = vmatpush1.msra.mxu0 %v1053
          %1079 = vmatprep.subr.mxu0 0.0
          %1080 = vmatpush1.msra.mxu0 %v1054
          %1081 = vmatprep.subr.mxu0 0.0
          %1082 = vmatpush1.msra.mxu0 %v1055
          %1083 = vmatprep.subr.mxu0 0.0
          %1084 = vmatpush1.msra.mxu0 %v1056
          %1085 = vmatprep.subr.mxu0 0.0
          %1086 = vmatpush1.msra.mxu0 %v1057
          %1087 = vmatprep.subr.mxu0 0.0
          %1088 = vmatpush1.msra.mxu0 %v1058
          %1089 = vmatprep.subr.mxu0 0.0
          %1090 = vmatpush1.msra.mxu0 %v1059
          %1091 = vmatprep.subr.mxu0 0.0
          %1092 = vmatpush1.msra.mxu0 %v1060
          %1093 = vmatprep.subr.mxu0 0.0
          %1094 = vmatpush1.msra.mxu0 0.0
          %1095 = vmatprep.subr.mxu0 0.0
          %1096 = vmatpush1.msra.mxu0 0.0
          %1097 = vmatprep.subr.mxu0 0.0
          %1098 = vmatpush1.msra.mxu0 0.0
          %1099 = vmatprep.subr.mxu0 0.0
          %1100 = vmatpush1.msra.mxu0 0.0
          %1101 = vmatprep.subr.mxu0 0.0
          %1102 = vmatpush1.msra.mxu0 0.0
          %1103 = vmatprep.subr.mxu0 0.0
          %1104 = vmatpush1.msra.mxu0 0.0
          %1105 = vmatprep.subr.mxu0 0.0
          %1106 = vmatpush1.msra.mxu0 0.0
          %1107 = vmatprep.subr.mxu0 0.0
          %1108 = vmatpush1.msra.mxu0 0.0
          %1109 = vmatprep.subr.mxu0 0.0
          %1110 = vmatpush1.msra.mxu0 0.0
          %1111 = vmatprep.subr.mxu0 0.0
          %1112 = vmatpush1.msra.mxu0 0.0
          %1113 = vmatprep.subr.mxu0 0.0
          %1114 = vmatpush1.msra.mxu0 0.0
          %1115 = vmatprep.subr.mxu0 0.0
          %1116 = vmatpush1.msra.mxu0 0.0
          %1117 = vmatprep.subr.mxu0 0.0
          %1118 = vmatpush1.msra.mxu0 0.0
          %1119 = vmatprep.subr.mxu0 0.0
          %1120 = vmatpush1.msra.mxu0 0.0
          %1121 = vmatprep.subr.mxu0 0.0
          %1122 = vmatpush1.msra.mxu0 0.0
          %1123 = vmatprep.subr.mxu0 0.0
          %1124 = vmatpush1.msra.mxu0 0.0
          %1125 = vmatprep.mubr.f32.mxu0 0.0
          %1126 = vmatmul.mubr.f32.gmra.mrb[0].mxu0 %v957
          %v1127 = vpop.f32.mrb[0].mxu0
          %v1128 = vadd.f32 0.0, %v1127
          %v1129 = vpop.f32.mrb[0].mxu0
          %1130 = vdwg.mxu0
          %1131 = vst [vmem:[#allocation2 + $0x4] sm:$0x1] %v1128
        $region60: #{conv2d_n_rel.1} parent=55 // pred_fallthru
          _
        %v1132 = vld [vmem:[%s262] sm:$0xf]
        %v1133 = vld [vmem:[%s262 + $0x4] sm:$0xf]
        %v1134 = vld [vmem:[%s1] sm:$0xf]
        %v1135 = vld [vmem:[%s1 + $0x4] sm:$0xf]
        %v1136 = vld [vmem:[%s1 + $0x8] sm:$0xf]
        %v1137 = vld [vmem:[%s1 + $0xc] sm:$0xf]
        %v1138 = vld [vmem:[%s1 + $0x10] sm:$0xf]
        %v1139 = vld [vmem:[%s1 + $0x14] sm:$0xf]
        %v1140 = vld [vmem:[%s1 + $0x18] sm:$0xf]
        %v1141 = vld [vmem:[%s1 + $0x1c] sm:$0xf]
        %v1142 = vld [vmem:[%s1 + $0x20] sm:$0xf]
        %v1143 = vld [vmem:[%s262 + $0x8] sm:$0x1]
        %s1144 = scalar_lea.vmem %s1, 36
        %v1145 = vld [vmem:[%s1144] sm:$0xf]
        %v1146 = vld [vmem:[%s1144 + $0x4] sm:$0xf]
        %v1147 = vld [vmem:[%s1144 + $0x8] sm:$0xf]
        %v1148 = vld [vmem:[%s1144 + $0xc] sm:$0xf]
        %v1149 = vld [vmem:[%s1144 + $0x10] sm:$0xf]
        %v1150 = vld [vmem:[%s1144 + $0x14] sm:$0xf]
        %v1151 = vld [vmem:[%s1144 + $0x18] sm:$0xf]
        %v1152 = vld [vmem:[%s1144 + $0x1c] sm:$0xf]
        %v1153 = vld [vmem:[%s1144 + $0x20] sm:$0xf]
        %v1157 = vunpack.c.l.b16 %v1132
        %v1158 = vunpack.c.l.b16 %v1133
        %v1159 = vunpack.c.l.b16 %v1143
        %v1160 = vpack.c.b16 %v1158, %v1157
        %v1161 = vpack.c.b16 %v1159, %v1159
        %vm1162 = vsmask.f32 7424
        %v1164 = vshrl.u32 %v1160, 16
        %v1166 = vshll.u32 %v1160, 16
        %v1168 = vrot.slane %v1166, 1
        %v1169 = vor.u32 %v1164, %v1168
        %v1171 = vshll.u32 %v1161, 16
        %v1173 = vrot.slane %v1171, 1
        %v1174 = vsel %vm1162, %v1169, %v1173
        %v1184 = vunpack.c.l.b16 %v1145
        %v1185 = vunpack.c.l.b16 %v1146
        %v1186 = vunpack.c.l.b16 %v1147
        %v1187 = vunpack.c.l.b16 %v1148
        %v1188 = vunpack.c.l.b16 %v1149
        %v1189 = vunpack.c.l.b16 %v1150
        %v1190 = vunpack.c.l.b16 %v1151
        %v1191 = vunpack.c.l.b16 %v1152
        %v1192 = vunpack.c.l.b16 %v1153
        %v1193 = vpack.c.b16 %v1185, %v1184
        %v1194 = vpack.c.b16 %v1187, %v1186
        %v1195 = vpack.c.b16 %v1189, %v1188
        %v1196 = vpack.c.b16 %v1191, %v1190
        %v1197 = vpack.c.b16 %v1192, %v1192
        %vm1202 = vcmask 588800
        %v1204 = vsel %vm1202, %v1174, 0
        %vm1206 = vcmask 1043456
        %v1208 = vsel %vm1206, %v1197, 0
        %1210 = vmatprep.subr.bf16.mxu0 0
        %1211 = vmatpush1.bf16.msra.mxu0 %v1193
        %1212 = vmatprep.subr.bf16.mxu0 0
        %1213 = vmatpush1.bf16.msra.mxu0 %v1194
        %1214 = vmatprep.subr.bf16.mxu0 0
        %1215 = vmatpush1.bf16.msra.mxu0 %v1195
        %1216 = vmatprep.subr.bf16.mxu0 0
        %1217 = vmatpush1.bf16.msra.mxu0 %v1196
        %1218 = vmatprep.subr.bf16.mxu0 0
        %1219 = vmatpush1.bf16.msra.mxu0 %v1208
        %1220 = vmatprep.subr.bf16.mxu0 0
        %1221 = vmatpush1.bf16.msra.mxu0 0
        %1222 = vmatprep.subr.bf16.mxu0 0
        %1223 = vmatpush1.bf16.msra.mxu0 0
        %1224 = vmatprep.subr.bf16.mxu0 0
        %1225 = vmatpush1.bf16.msra.mxu0 0
        %1226 = vmatprep.subr.bf16.mxu0 0
        %1227 = vmatpush1.bf16.msra.mxu0 0
        %1228 = vmatprep.subr.bf16.mxu0 0
        %1229 = vmatpush1.bf16.msra.mxu0 0
        %1230 = vmatprep.subr.bf16.mxu0 0
        %1231 = vmatpush1.bf16.msra.mxu0 0
        %1232 = vmatprep.subr.bf16.mxu0 0
        %1233 = vmatpush1.bf16.msra.mxu0 0
        %1234 = vmatprep.subr.bf16.mxu0 0
        %1235 = vmatpush1.bf16.msra.mxu0 0
        %1236 = vmatprep.subr.bf16.mxu0 0
        %1237 = vmatpush1.bf16.msra.mxu0 0
        %1238 = vmatprep.subr.bf16.mxu0 0
        %1239 = vmatpush1.bf16.msra.mxu0 0
        %1240 = vmatprep.subr.bf16.mxu0 0
        %1241 = vmatpush1.bf16.msra.mxu0 0
        %1242 = vmatprep.mubr.bf16.mxu0 0
        %1243 = vmatmul.mubr.bf16.gmra.mrb[0].mxu0 %v1204
        %v1244 = vpop.f32.mrb[0].mxu0
        %v1245 = vadd.f32 0.0, %v1244
        %v1246 = vpop.f32.mrb[0].mxu0
        %v1247 = vpop.f32.mrb[0].mxu0
        %v1248 = vadd.f32 0.0, %v1247
        %v1249 = vpop.f32.mrb[0].mxu0
        %1250 = vdwg.mxu0
        %v1260 = vunpack.c.l.b16 %v1134
        %v1261 = vunpack.c.l.b16 %v1135
        %v1262 = vunpack.c.l.b16 %v1136
        %v1263 = vunpack.c.l.b16 %v1137
        %v1264 = vunpack.c.l.b16 %v1138
        %v1265 = vunpack.c.l.b16 %v1139
        %v1266 = vunpack.c.l.b16 %v1140
        %v1267 = vunpack.c.l.b16 %v1141
        %v1268 = vunpack.c.l.b16 %v1142
        %v1269 = vpack.c.b16 %v1261, %v1260
        %v1270 = vpack.c.b16 %v1263, %v1262
        %v1271 = vpack.c.b16 %v1265, %v1264
        %v1272 = vpack.c.b16 %v1267, %v1266
        %v1273 = vpack.c.b16 %v1268, %v1268
        %v1278 = vsel %vm1202, %v1160, 0
        %v1281 = vsel %vm1206, %v1273, 0
        %1283 = vmatprep.subr.bf16.mxu0 0
        %1284 = vmatpush1.bf16.msra.mxu0 %v1269
        %1285 = vmatprep.subr.bf16.mxu0 0
        %1286 = vmatpush1.bf16.msra.mxu0 %v1270
        %1287 = vmatprep.subr.bf16.mxu0 0
        %1288 = vmatpush1.bf16.msra.mxu0 %v1271
        %1289 = vmatprep.subr.bf16.mxu0 0
        %1290 = vmatpush1.bf16.msra.mxu0 %v1272
        %1291 = vmatprep.subr.bf16.mxu0 0
        %1292 = vmatpush1.bf16.msra.mxu0 %v1281
        %1293 = vmatprep.subr.bf16.mxu0 0
        %1294 = vmatpush1.bf16.msra.mxu0 0
        %1295 = vmatprep.subr.bf16.mxu0 0
        %1296 = vmatpush1.bf16.msra.mxu0 0
        %1297 = vmatprep.subr.bf16.mxu0 0
        %1298 = vmatpush1.bf16.msra.mxu0 0
        %1299 = vmatprep.subr.bf16.mxu0 0
        %1300 = vmatpush1.bf16.msra.mxu0 0
        %1301 = vmatprep.subr.bf16.mxu0 0
        %1302 = vmatpush1.bf16.msra.mxu0 0
        %1303 = vmatprep.subr.bf16.mxu0 0
        %1304 = vmatpush1.bf16.msra.mxu0 0
        %1305 = vmatprep.subr.bf16.mxu0 0
        %1306 = vmatpush1.bf16.msra.mxu0 0
        %1307 = vmatprep.subr.bf16.mxu0 0
        %1308 = vmatpush1.bf16.msra.mxu0 0
        %1309 = vmatprep.subr.bf16.mxu0 0
        %1310 = vmatpush1.bf16.msra.mxu0 0
        %1311 = vmatprep.subr.bf16.mxu0 0
        %1312 = vmatpush1.bf16.msra.mxu0 0
        %1313 = vmatprep.subr.bf16.mxu0 0
        %1314 = vmatpush1.bf16.msra.mxu0 0
        %1315 = vmatprep.mubr.bf16.mxu0 0
        %1316 = vmatmul.mubr.bf16.gmra.mrb[0].mxu0 %v1278
        %v1317 = vpop.f32.mrb[0].mxu0
        %v1318 = vadd.f32 %v1245, %v1317
        %v1319 = vpop.f32.mrb[0].mxu0
        %v1320 = vpop.f32.mrb[0].mxu0
        %v1321 = vadd.f32 %v1248, %v1320
        %v1322 = vpop.f32.mrb[0].mxu0
        %1323 = vdwg.mxu0
        %v1324 = vld [vmem:[%s262] sm:$0xe]
        %s1325 = scalar_lea.vmem %s1, 72
        %v1326 = vld [vmem:[%s1325] sm:$0xf]
        %v1327 = vld [vmem:[%s1325 + $0x4] sm:$0xf]
        %v1328 = vld [vmem:[%s1325 + $0x8] sm:$0xf]
        %v1329 = vld [vmem:[%s1325 + $0xc] sm:$0xf]
        %v1330 = vld [vmem:[%s1325 + $0x10] sm:$0xf]
        %v1331 = vld [vmem:[%s1325 + $0x14] sm:$0xf]
        %v1332 = vld [vmem:[%s1325 + $0x18] sm:$0xf]
        %v1333 = vld [vmem:[%s1325 + $0x1c] sm:$0xf]
        %v1334 = vld [vmem:[%s1325 + $0x20] sm:$0xf]
        %v1336 = vunpack.c.l.b16 %v1324
        %v1337 = vpack.c.b16 %v1158, %v1336
        %vm1338 = vcmask 1046528
        %v1339 = vrot.slane %v1337, 1
        %v1340 = vrot.slane %v1161, 1
        %v1341 = vsel %vm1338, %v1339, %v1340
        %v1351 = vunpack.c.l.b16 %v1326
        %v1352 = vunpack.c.l.b16 %v1327
        %v1353 = vunpack.c.l.b16 %v1328
        %v1354 = vunpack.c.l.b16 %v1329
        %v1355 = vunpack.c.l.b16 %v1330
        %v1356 = vunpack.c.l.b16 %v1331
        %v1357 = vunpack.c.l.b16 %v1332
        %v1358 = vunpack.c.l.b16 %v1333
        %v1359 = vunpack.c.l.b16 %v1334
        %v1360 = vpack.c.b16 %v1352, %v1351
        %v1361 = vpack.c.b16 %v1354, %v1353
        %v1362 = vpack.c.b16 %v1356, %v1355
        %v1363 = vpack.c.b16 %v1358, %v1357
        %v1364 = vpack.c.b16 %v1359, %v1359
        %v1370 = vsel %vm1202, %v1341, 0
        %v1373 = vsel %vm1206, %v1364, 0
        %1375 = vmatprep.subr.bf16.mxu0 0
        %1376 = vmatpush1.bf16.msra.mxu0 %v1360
        %1377 = vmatprep.subr.bf16.mxu0 0
        %1378 = vmatpush1.bf16.msra.mxu0 %v1361
        %1379 = vmatprep.subr.bf16.mxu0 0
        %1380 = vmatpush1.bf16.msra.mxu0 %v1362
        %1381 = vmatprep.subr.bf16.mxu0 0
        %1382 = vmatpush1.bf16.msra.mxu0 %v1363
        %1383 = vmatprep.subr.bf16.mxu0 0
        %1384 = vmatpush1.bf16.msra.mxu0 %v1373
        %1385 = vmatprep.subr.bf16.mxu0 0
        %1386 = vmatpush1.bf16.msra.mxu0 0
        %1387 = vmatprep.subr.bf16.mxu0 0
        %1388 = vmatpush1.bf16.msra.mxu0 0
        %1389 = vmatprep.subr.bf16.mxu0 0
        %1390 = vmatpush1.bf16.msra.mxu0 0
        %1391 = vmatprep.subr.bf16.mxu0 0
        %1392 = vmatpush1.bf16.msra.mxu0 0
        %1393 = vmatprep.subr.bf16.mxu0 0
        %1394 = vmatpush1.bf16.msra.mxu0 0
        %1395 = vmatprep.subr.bf16.mxu0 0
        %1396 = vmatpush1.bf16.msra.mxu0 0
        %1397 = vmatprep.subr.bf16.mxu0 0
        %1398 = vmatpush1.bf16.msra.mxu0 0
        %1399 = vmatprep.subr.bf16.mxu0 0
        %1400 = vmatpush1.bf16.msra.mxu0 0
        %1401 = vmatprep.subr.bf16.mxu0 0
        %1402 = vmatpush1.bf16.msra.mxu0 0
        %1403 = vmatprep.subr.bf16.mxu0 0
        %1404 = vmatpush1.bf16.msra.mxu0 0
        %1405 = vmatprep.subr.bf16.mxu0 0
        %1406 = vmatpush1.bf16.msra.mxu0 0
        %1407 = vmatprep.mubr.bf16.mxu0 0
        %1408 = vmatmul.mubr.bf16.gmra.mrb[0].mxu0 %v1370
        %v1409 = vpop.f32.mrb[0].mxu0
        %v1410 = vadd.f32 0.0, %v1409
        %v1411 = vpop.f32.mrb[0].mxu0
        %v1412 = vpop.f32.mrb[0].mxu0
        %v1413 = vadd.f32 0.0, %v1412
        %v1414 = vpop.f32.mrb[0].mxu0
        %1415 = vdwg.mxu0
        %v1416 = vadd.f32 %v1318, %v1410
        %v1417 = vadd.f32 %v1321, %v1413
        %v1418 = vld [vmem:[#allocation2 + $0x3] sm:$0x1]
        %v1419 = vlaneseq
        %v1420 = vshrl.u32 %v1419, 7
        %v1421 = vsub.s32 0, %v1420
        %v1422 = vrot.slane %v1418, %v1421
        %v1423 = vmul.f32 %v1416, %v1422
        %v1424 = vmul.f32 %v1417, %v1422
        %v1425 = vld [vmem:[#allocation2 + $0x4] sm:$0x1]
        %v1426 = vlaneseq
        %v1427 = vshrl.u32 %v1426, 7
        %v1428 = vsub.s32 0, %v1427
        %v1429 = vrot.slane %v1425, %v1428
        %v1430 = vadd.f32 %v1423, %v1429
        %v1431 = vadd.f32 %v1424, %v1429
        %v1432 = vmul.f32 %v1430, 0.01
        %v1433 = vmul.f32 %v1431, 0.01
        %v1434 = vmax.f32 %v1430, %v1432
        %v1435 = vmax.f32 %v1431, %v1433
        %1436 = vst [vmem:[%s269] sm:$0xff] %v1434
        %1437 = vst [vmem:[%s269 + $0x8] sm:$0xff] %v1435
      $region56: #{conv2d_n_rel.1} parent=43 // pred_fallthru
        _
      %s1438 = smul.u32 %s21, %s22
      %s1439 = smul.u32 2, %s1438
      %p1440 = scmp.lt.s32.totalorder %s1439, 3
      %s1441 = scalar_select %p1440, %s1439, 3
      %s1442 = smul.addr %s1441, 8
      %s1443 = scalar_lea.vmem %s6, %s1442
      // Predicated region
      $region61: #{conv2d_n_rel.1} parent=43 // pred_check
        %p1444 = pneg %p180
      $region62: #{conv2d_n_rel.1} parent=43 // pred_check_branch
        %1446 = sbr.rel (%p1444) target = $region64
      $region63: #{conv2d_n_rel.1} parent=43 // pred_region
        %s1447 = smul.u32 %s21, %s22
        %s1448 = smul.u32 2, %s1447
      $region64: #{conv2d_n_rel.1} parent=43 // pred_fallthru
        _
    $region44: #{conv2d_n_rel.1} parent=5 // pred_fallthru
      _
    %p1449 = scmp.le.s32.totalorder 2, %s12
    // Predicated region
    $region65: #{conv2d_n_rel.1} parent=5 // pred_check
      %p1450 = pneg %p1449
    $region66: #{conv2d_n_rel.1} parent=5 // pred_check_branch
      %1452 = sbr.rel (%p1450) target = $region68
    $region67: #{conv2d_n_rel.1} parent=5 // pred_region
      %s1453 = ssub.s32 %s12, 2
      // Predicated region
      $region69: #{conv2d_n_rel.1} parent=67 // pred_check
        %p1454 = pneg %p186
      $region70: #{conv2d_n_rel.1} parent=67 // pred_check_branch
        %1456 = sbr.rel (%p1454) target = $region72
      $region71: #{conv2d_n_rel.1} parent=67 // pred_region
        %s1457 = smul.u32 %s23, %s24
        %s1458 = smul.u32 2, %s1457
        %p1459 = scmp.lt.s32.totalorder %s1458, 3
        %s1460 = scalar_select %p1459, %s1458, 3
        %s1461 = smul.addr %s1460, 8
        %s1462 = scalar_lea.vmem %s6, %s1461
      $region72: #{conv2d_n_rel.1} parent=67 // pred_fallthru
        _
    $region68: #{conv2d_n_rel.1} parent=5 // pred_fallthru
      _
  $region6: #{conv2d_n_rel.1} parent=0 // loop_footer
    %s16 = sadd.s32 1, %s12
  $region7: #{conv2d_n_rel.1} parent=0 // loop_footer_branch
    %11 = sbr.rel target = $region3
  $region8: #{conv2d_n_rel.1} parent=0 // loop_exit
    _

</llo_original>
